<compile_context>
chip_gen: v5e
topology: v5e:2x2
jax: 0.10.0
libtpu: 0.0.40
codegen_flags: <defaults>
</compile_context>

<pallas_src>
import jax
import jax.numpy as jnp
from jax import lax
from jax.experimental import pallas as pl
from jax.experimental.pallas import tpu as pltpu

HIDDEN_SIZE = 5
HIDDEN_PAD = 8            # H padded so each gate occupies one 8-sublane group
INPUT_SIZE = 36
NUM_CLASSES = 2
NUM_LAYERS = 1            # single-layer LSTM, as in the PyTorch module


def _lstm1_kernel(x_ref, wih_ref, whh_ref, b_ref, whead_ref, bhead_ref,
                  out_ref, gx_scr, h_scr, c_scr):
    Tc, _, B = x_ref.shape            # (Tc, I, B): time-chunk, feature-sublane, batch-lane
    H, Hp = HIDDEN_SIZE, HIDDEN_PAD
    G = 4 * Hp                        # 32 gate rows (i,f,g,o groups of 8)

    chunk = pl.program_id(0)
    n_chunks = pl.num_programs(0)

    # ---- init recurrent state at the first time chunk (h_0 = c_0 = 0)
    @pl.when(chunk == 0)
    def _():
        h_scr[...] = jnp.zeros_like(h_scr)
        c_scr[...] = jnp.zeros_like(c_scr)

    # ---- hoisted input projection for this chunk (independent across t, off the
    #      serial path): gx[t] = W_ih_pad @ x_t + (b_ih + b_hh), hidden-major (32, B)
    wih = wih_ref[...]                # (32, I)
    bcol = b_ref[...]                 # (32, 1)

    def proj_body(t, carry):
        gx_scr[t] = (jnp.dot(wih, x_ref[t], preferred_element_type=jnp.float32)
                     + bcol)
        return carry

    lax.fori_loop(0, Tc, proj_body, 0, unroll=min(Tc, 8))

    # ---- recurrence: hidden-major gates (32, B); W_hh matvec as H unrolled
    #      broadcast-FMAs on the VPU (no per-step MXU push/pop).  Weight-column
    #      broadcasts are hoisted out of the loop.
    whh = whh_ref[...]                # (32, Hp), padded rows/cols are zero
    wcols = [jnp.broadcast_to(whh[:, j:j + 1], (G, B)) for j in range(H)]

    def step(t, carry):
        h, c = carry                  # (Hp, B) each; padded rows stay exactly 0
        gates = gx_scr[t]             # aligned leading-axis read, (32, B)
        for j in range(H):            # static unrolled broadcast-FMA (VPU)
            gates = gates + wcols[j] * h[j:j + 1, :]
        i_g = jax.nn.sigmoid(gates[0 * Hp:1 * Hp, :])
        f_g = jax.nn.sigmoid(gates[1 * Hp:2 * Hp, :])
        g_g = jnp.tanh(gates[2 * Hp:3 * Hp, :])
        o_g = jax.nn.sigmoid(gates[3 * Hp:4 * Hp, :])
        c_new = f_g * c + i_g * g_g
        h_new = o_g * jnp.tanh(c_new)
        return (h_new, c_new)

    h0 = h_scr[...]
    c0 = c_scr[...]
    hn, cn = lax.fori_loop(0, Tc, step, (h0, c0),
                           unroll=(Tc if Tc <= 16 else 8))
    h_scr[...] = hn
    c_scr[...] = cn

    # ---- head at the last chunk only: ReLU -> fused (fc_1 @ fc) -> sigmoid, (C, B)
    @pl.when(chunk == n_chunks - 1)
    def _():
        z = jnp.maximum(hn, 0.0)
        out_ref[...] = jax.nn.sigmoid(
            jnp.dot(whead_ref[...], z, preferred_element_type=jnp.float32)
            + bhead_ref[...])


def _round_up(v, m):
    return (v + m - 1) // m * m


def _pick_time_chunk(T, cap=128):
    """Largest chunk <= cap that divides T (falls back to 1 for awkward T)."""
    if T <= cap:
        return T
    for tc in range(cap, 0, -1):
        if T % tc == 0:
            return tc
    return T


def _pad_gate_rows(w, h, hp):
    """(4*h, ...) -> (4*hp, ...): zero-pad each gate's h rows up to hp."""
    w4 = w.reshape((4, h) + w.shape[1:])
    pad = [(0, 0)] * w4.ndim
    pad[1] = (0, hp - h)
    return jnp.pad(w4, pad).reshape((4 * hp,) + w.shape[1:])


@jax.jit
def lstm1_forward(x, params):
    """x: (B, T, INPUT_SIZE) float32 (batch_first, like the PyTorch module)."""
    B, T, I = x.shape
    H, Hp, C = HIDDEN_SIZE, HIDDEN_PAD, NUM_CLASSES

    # --- parameter re-layout: hidden-major, H padded 5 -> 8 (padded slots are zero)
    wih_pad = _pad_gate_rows(params["w_ih"], H, Hp)                        # (32, I)
    whh_pad = _pad_gate_rows(params["w_hh"], H, Hp)                        # (32, H)
    whh_pad = jnp.pad(whh_pad, ((0, 0), (0, Hp - H)))                      # (32, Hp)
    b_pad = _pad_gate_rows((params["b_ih"] + params["b_hh"])[:, None], H, Hp)  # (32, 1)
    # Fused head: sigmoid(W2 @ (W1 @ relu(h) + b1) + b2) = sigmoid((W2 W1) h' + W2 b1 + b2)
    w_head = params["fc2_w"] @ params["fc1_w"]                             # (C, H)
    w_head = jnp.pad(w_head, ((0, 0), (0, Hp - H)))                        # (C, Hp)
    b_head = (params["fc1_b"] @ params["fc2_w"].T + params["fc2_b"])[:, None]  # (C, 1)

    # time-major, feature-sublane, batch-lane: (T, I, B)
    # TODO(synk): fold this transpose into the x BlockSpec index_map for long sequences.
    x_tm = jnp.transpose(x, (1, 2, 0))

    Tc = _pick_time_chunk(T)
    n_chunks = T // Tc

    # padded-VMEM footprint (lane dim pads to 128, f32 sublane to 8)
    lane_b = _round_up(B, 128)
    x_tile = Tc * _round_up(I, 8) * lane_b * 4
    gx_bytes = Tc * 4 * Hp * lane_b * 4
    need = 2 * x_tile + gx_bytes + (2 << 20)          # double-buffered x + gx + headroom
    vmem_limit = int(min(64 << 20, max(16 << 20, need)))

    full = lambda a: pl.BlockSpec(a.shape, lambda c, n=a.ndim: (0,) * n)

    out_cb = pl.pallas_call(
        _lstm1_kernel,
        out_shape=jax.ShapeDtypeStruct((C, B), jnp.float32),
        grid_spec=pltpu.PrefetchScalarGridSpec(
            num_scalar_prefetch=0,
            grid=(n_chunks,),
            in_specs=[
                pl.BlockSpec((Tc, I, B), lambda c: (c, 0, 0)),   # x, chunked in time
                full(wih_pad),
                full(whh_pad),
                full(b_pad),
                full(w_head),
                full(b_head),
            ],
            out_specs=pl.BlockSpec((C, B), lambda c: (0, 0)),
            scratch_shapes=[
                pltpu.VMEM((Tc, 4 * Hp, B), jnp.float32),   # hoisted gates_x (hidden-major)
                pltpu.VMEM((Hp, B), jnp.float32),           # h carried across chunks
                pltpu.VMEM((Hp, B), jnp.float32),           # c carried across chunks
            ],
        ),
        compiler_params=pltpu.CompilerParams(
            dimension_semantics=("arbitrary",),   # recurrence is serial over time chunks
            vmem_limit_bytes=vmem_limit,
        ),
    )(x_tm, wih_pad, whh_pad, b_pad, w_head, b_head)

    return out_cb.T                                               # (B, C)


def lstm1_reference(x, params):
    """Pure-JAX reference matching torch.nn.LSTM + unfused head (for verification)."""
    B = x.shape[0]
    H = HIDDEN_SIZE
    w_ih, w_hh = params["w_ih"], params["w_hh"]
    b = params["b_ih"] + params["b_hh"]

    def step(carry, x_t):
        h, c = carry
        gates = x_t @ w_ih.T + h @ w_hh.T + b
        i = jax.nn.sigmoid(gates[:, 0 * H:1 * H])
        f = jax.nn.sigmoid(gates[:, 1 * H:2 * H])
        g = jnp.tanh(gates[:, 2 * H:3 * H])
        o = jax.nn.sigmoid(gates[:, 3 * H:4 * H])
        c_new = f * c + i * g
        h_new = o * jnp.tanh(c_new)
        return (h_new, c_new), None

    h0 = jnp.zeros((B, H), jnp.float32)
    c0 = jnp.zeros((B, H), jnp.float32)
    (hn, _), _ = lax.scan(step, (h0, c0), jnp.transpose(x, (1, 0, 2)))
    z = jnp.maximum(hn, 0.0)
    z = z @ params["fc1_w"].T + params["fc1_b"]
    z = z @ params["fc2_w"].T + params["fc2_b"]
    return jax.nn.sigmoid(z)


def init_params(key):
    """Deterministic synthetic parameters with PyTorch-module shapes."""
    H, I, C = HIDDEN_SIZE, INPUT_SIZE, NUM_CLASSES
    ks = jax.random.split(key, 8)
    u = lambda k, shape, s: jax.random.uniform(k, shape, jnp.float32, -s, s)
    s_lstm = 1.0 / jnp.sqrt(H)
    return {
        "w_ih": u(ks[0], (4 * H, I), s_lstm),
        "w_hh": u(ks[1], (4 * H, H), s_lstm),
        "b_ih": u(ks[2], (4 * H,), s_lstm),
        "b_hh": u(ks[3], (4 * H,), s_lstm),
        "fc1_w": u(ks[4], (128, H), 1.0 / jnp.sqrt(H)),
        "fc1_b": u(ks[5], (128,), 1.0 / jnp.sqrt(H)),
        "fc2_w": u(ks[6], (C, 128), 1.0 / jnp.sqrt(128.0)),
        "fc2_b": u(ks[7], (C,), 1.0 / jnp.sqrt(128.0)),
    }


if __name__ == "__main__":
    key = jax.random.PRNGKey(0)
    k_x, k_p = jax.random.split(key)

    batch, seq = 2, 8
    x = jax.random.normal(k_x, (batch, seq, INPUT_SIZE), jnp.float32)
    params = init_params(k_p)

    out = jax.block_until_ready(lstm1_forward(x, params))
    ref = lstm1_reference(x, params)

    assert out.shape == (batch, NUM_CLASSES)
    assert jnp.allclose(out, ref, atol=5e-5, rtol=5e-5), (out, ref)

    print("KERNEL_OK")
</pallas_src>

<mosaic_0001>
module attributes {stable_mosaic.version = 11 : i64} {
  func.func @_lstm1_kernel(%arg0: i32, %arg1: memref<8x36x2xf32, #tpu.memory_space<vmem>>, %arg2: memref<32x36xf32, #tpu.memory_space<vmem>>, %arg3: memref<32x8xf32, #tpu.memory_space<vmem>>, %arg4: memref<32x1xf32, #tpu.memory_space<vmem>>, %arg5: memref<2x8xf32, #tpu.memory_space<vmem>>, %arg6: memref<2x1xf32, #tpu.memory_space<vmem>>, %arg7: memref<2x2xf32, #tpu.memory_space<vmem>>, %arg8: memref<8x32x2xf32, #tpu.memory_space<vmem>>, %arg9: memref<8x2xf32, #tpu.memory_space<vmem>>, %arg10: memref<8x2xf32, #tpu.memory_space<vmem>>) attributes {dimension_semantics = [#tpu.dimension_semantics<arbitrary>], iteration_bounds = array<i64: 1>, scalar_prefetch = 0 : i64, scratch_operands = 3 : i64, tpu.core_type = #tpu.core_type<tc>, window_params = [{transform_indices = @transform_0, window_bounds = array<i64: 8, 36, 2>}, {pipeline_mode = #tpu.pipeline_mode<synchronous>, transform_indices = @transform_1, window_bounds = array<i64: 32, 36>}, {pipeline_mode = #tpu.pipeline_mode<synchronous>, transform_indices = @transform_2, window_bounds = array<i64: 32, 8>}, {pipeline_mode = #tpu.pipeline_mode<synchronous>, transform_indices = @transform_3, window_bounds = array<i64: 32, 1>}, {pipeline_mode = #tpu.pipeline_mode<synchronous>, transform_indices = @transform_4, window_bounds = array<i64: 2, 8>}, {pipeline_mode = #tpu.pipeline_mode<synchronous>, transform_indices = @transform_5, window_bounds = array<i64: 2, 1>}, {pipeline_mode = #tpu.pipeline_mode<synchronous>, transform_indices = @transform_6, window_bounds = array<i64: 2, 2>}]} {
    %c0_i32 = arith.constant 0 : i32
    %0 = arith.cmpi eq, %arg0, %c0_i32 : i32
    %1 = arith.extui %0 : i1 to i32
    %c0_i32_0 = arith.constant 0 : i32
    %2 = arith.cmpi ne, %1, %c0_i32_0 : i32
    scf.if %2 {
      %cst_105 = arith.constant 0.000000e+00 : f32
      %492 = vector.broadcast %cst_105 : f32 to vector<8x2xf32>
      %c0_106 = arith.constant 0 : index
      %c0_107 = arith.constant 0 : index
      %493 = vector.load %arg9[%c0_106, %c0_107] : memref<8x2xf32, #tpu.memory_space<vmem>>, vector<8x2xf32>
      tpu.vector_store %arg9[%c0_106, %c0_107], %492 {strides = array<i32>} : memref<8x2xf32, #tpu.memory_space<vmem>>, vector<8x2xf32>,
      %cst_108 = arith.constant 0.000000e+00 : f32
      %494 = vector.broadcast %cst_108 : f32 to vector<8x2xf32>
      %c0_109 = arith.constant 0 : index
      %c0_110 = arith.constant 0 : index
      %495 = vector.load %arg10[%c0_109, %c0_110] : memref<8x2xf32, #tpu.memory_space<vmem>>, vector<8x2xf32>
      tpu.vector_store %arg10[%c0_109, %c0_110], %494 {strides = array<i32>} : memref<8x2xf32, #tpu.memory_space<vmem>>, vector<8x2xf32>,
    } else {
    }
    %c0 = arith.constant 0 : index
    %c0_1 = arith.constant 0 : index
    %3 = vector.load %arg2[%c0, %c0_1] : memref<32x36xf32, #tpu.memory_space<vmem>>, vector<32x36xf32>
    %c0_2 = arith.constant 0 : index
    %c0_3 = arith.constant 0 : index
    %4 = vector.load %arg4[%c0_2, %c0_3] : memref<32x1xf32, #tpu.memory_space<vmem>>, vector<32x1xf32>
    %c0_i32_4 = arith.constant 0 : i32
    %5 = arith.index_cast %c0_i32_4 : i32 to index
    %c0_5 = arith.constant 0 : index
    %c0_6 = arith.constant 0 : index
    %6 = vector.load %arg1[%5, %c0_5, %c0_6] : memref<8x36x2xf32, #tpu.memory_space<vmem>>, vector<1x36x2xf32>
    %7 = vector.shape_cast %6 : vector<1x36x2xf32> to vector<36x2xf32>
    %cst = arith.constant dense<0.000000e+00> : vector<32x2xf32>
    %8 = tpu.matmul %3, %7, %cst {dimension_numbers = #tpu.dot_dimension_numbers<[1], [0], [0], [1], [0, 0, 1, 1], [], []>} : vector<32x36xf32>, vector<36x2xf32>, vector<32x2xf32> -> vector<32x2xf32>
    %9 = vector.broadcast %4 : vector<32x1xf32> to vector<32x2xf32>
    %10 = arith.addf %8, %9 : vector<32x2xf32>
    %11 = arith.index_cast %c0_i32_4 : i32 to index
    %c0_7 = arith.constant 0 : index
    %c0_8 = arith.constant 0 : index
    %12 = vector.load %arg8[%11, %c0_7, %c0_8] : memref<8x32x2xf32, #tpu.memory_space<vmem>>, vector<1x32x2xf32>
    %13 = vector.shape_cast %12 : vector<1x32x2xf32> to vector<32x2xf32>
    %14 = vector.shape_cast %10 : vector<32x2xf32> to vector<1x32x2xf32>
    tpu.vector_store %arg8[%11, %c0_7, %c0_8], %14 {strides = array<i32>} : memref<8x32x2xf32, #tpu.memory_space<vmem>>, vector<1x32x2xf32>,
    %c1_i32 = arith.constant 1 : i32
    %15 = arith.index_cast %c1_i32 : i32 to index
    %c0_9 = arith.constant 0 : index
    %c0_10 = arith.constant 0 : index
    %16 = vector.load %arg1[%15, %c0_9, %c0_10] : memref<8x36x2xf32, #tpu.memory_space<vmem>>, vector<1x36x2xf32>
    %17 = vector.shape_cast %16 : vector<1x36x2xf32> to vector<36x2xf32>
    %cst_11 = arith.constant dense<0.000000e+00> : vector<32x2xf32>
    %18 = tpu.matmul %3, %17, %cst_11 {dimension_numbers = #tpu.dot_dimension_numbers<[1], [0], [0], [1], [0, 0, 1, 1], [], []>} : vector<32x36xf32>, vector<36x2xf32>, vector<32x2xf32> -> vector<32x2xf32>
    %19 = vector.broadcast %4 : vector<32x1xf32> to vector<32x2xf32>
    %20 = arith.addf %18, %19 : vector<32x2xf32>
    %21 = arith.index_cast %c1_i32 : i32 to index
    %c0_12 = arith.constant 0 : index
    %c0_13 = arith.constant 0 : index
    %22 = vector.load %arg8[%21, %c0_12, %c0_13] : memref<8x32x2xf32, #tpu.memory_space<vmem>>, vector<1x32x2xf32>
    %23 = vector.shape_cast %22 : vector<1x32x2xf32> to vector<32x2xf32>
    %24 = vector.shape_cast %20 : vector<32x2xf32> to vector<1x32x2xf32>
    tpu.vector_store %arg8[%21, %c0_12, %c0_13], %24 {strides = array<i32>} : memref<8x32x2xf32, #tpu.memory_space<vmem>>, vector<1x32x2xf32>,
    %c2_i32 = arith.constant 2 : i32
    %25 = arith.index_cast %c2_i32 : i32 to index
    %c0_14 = arith.constant 0 : index
    %c0_15 = arith.constant 0 : index
    %26 = vector.load %arg1[%25, %c0_14, %c0_15] : memref<8x36x2xf32, #tpu.memory_space<vmem>>, vector<1x36x2xf32>
    %27 = vector.shape_cast %26 : vector<1x36x2xf32> to vector<36x2xf32>
    %cst_16 = arith.constant dense<0.000000e+00> : vector<32x2xf32>
    %28 = tpu.matmul %3, %27, %cst_16 {dimension_numbers = #tpu.dot_dimension_numbers<[1], [0], [0], [1], [0, 0, 1, 1], [], []>} : vector<32x36xf32>, vector<36x2xf32>, vector<32x2xf32> -> vector<32x2xf32>
    %29 = vector.broadcast %4 : vector<32x1xf32> to vector<32x2xf32>
    %30 = arith.addf %28, %29 : vector<32x2xf32>
    %31 = arith.index_cast %c2_i32 : i32 to index
    %c0_17 = arith.constant 0 : index
    %c0_18 = arith.constant 0 : index
    %32 = vector.load %arg8[%31, %c0_17, %c0_18] : memref<8x32x2xf32, #tpu.memory_space<vmem>>, vector<1x32x2xf32>
    %33 = vector.shape_cast %32 : vector<1x32x2xf32> to vector<32x2xf32>
    %34 = vector.shape_cast %30 : vector<32x2xf32> to vector<1x32x2xf32>
    tpu.vector_store %arg8[%31, %c0_17, %c0_18], %34 {strides = array<i32>} : memref<8x32x2xf32, #tpu.memory_space<vmem>>, vector<1x32x2xf32>,
    %c3_i32 = arith.constant 3 : i32
    %35 = arith.index_cast %c3_i32 : i32 to index
    %c0_19 = arith.constant 0 : index
    %c0_20 = arith.constant 0 : index
    %36 = vector.load %arg1[%35, %c0_19, %c0_20] : memref<8x36x2xf32, #tpu.memory_space<vmem>>, vector<1x36x2xf32>
    %37 = vector.shape_cast %36 : vector<1x36x2xf32> to vector<36x2xf32>
    %cst_21 = arith.constant dense<0.000000e+00> : vector<32x2xf32>
    %38 = tpu.matmul %3, %37, %cst_21 {dimension_numbers = #tpu.dot_dimension_numbers<[1], [0], [0], [1], [0, 0, 1, 1], [], []>} : vector<32x36xf32>, vector<36x2xf32>, vector<32x2xf32> -> vector<32x2xf32>
    %39 = vector.broadcast %4 : vector<32x1xf32> to vector<32x2xf32>
    %40 = arith.addf %38, %39 : vector<32x2xf32>
    %41 = arith.index_cast %c3_i32 : i32 to index
    %c0_22 = arith.constant 0 : index
    %c0_23 = arith.constant 0 : index
    %42 = vector.load %arg8[%41, %c0_22, %c0_23] : memref<8x32x2xf32, #tpu.memory_space<vmem>>, vector<1x32x2xf32>
    %43 = vector.shape_cast %42 : vector<1x32x2xf32> to vector<32x2xf32>
    %44 = vector.shape_cast %40 : vector<32x2xf32> to vector<1x32x2xf32>
    tpu.vector_store %arg8[%41, %c0_22, %c0_23], %44 {strides = array<i32>} : memref<8x32x2xf32, #tpu.memory_space<vmem>>, vector<1x32x2xf32>,
    %c4_i32 = arith.constant 4 : i32
    %45 = arith.index_cast %c4_i32 : i32 to index
    %c0_24 = arith.constant 0 : index
    %c0_25 = arith.constant 0 : index
    %46 = vector.load %arg1[%45, %c0_24, %c0_25] : memref<8x36x2xf32, #tpu.memory_space<vmem>>, vector<1x36x2xf32>
    %47 = vector.shape_cast %46 : vector<1x36x2xf32> to vector<36x2xf32>
    %cst_26 = arith.constant dense<0.000000e+00> : vector<32x2xf32>
    %48 = tpu.matmul %3, %47, %cst_26 {dimension_numbers = #tpu.dot_dimension_numbers<[1], [0], [0], [1], [0, 0, 1, 1], [], []>} : vector<32x36xf32>, vector<36x2xf32>, vector<32x2xf32> -> vector<32x2xf32>
    %49 = vector.broadcast %4 : vector<32x1xf32> to vector<32x2xf32>
    %50 = arith.addf %48, %49 : vector<32x2xf32>
    %51 = arith.index_cast %c4_i32 : i32 to index
    %c0_27 = arith.constant 0 : index
    %c0_28 = arith.constant 0 : index
    %52 = vector.load %arg8[%51, %c0_27, %c0_28] : memref<8x32x2xf32, #tpu.memory_space<vmem>>, vector<1x32x2xf32>
    %53 = vector.shape_cast %52 : vector<1x32x2xf32> to vector<32x2xf32>
    %54 = vector.shape_cast %50 : vector<32x2xf32> to vector<1x32x2xf32>
    tpu.vector_store %arg8[%51, %c0_27, %c0_28], %54 {strides = array<i32>} : memref<8x32x2xf32, #tpu.memory_space<vmem>>, vector<1x32x2xf32>,
    %c5_i32 = arith.constant 5 : i32
    %55 = arith.index_cast %c5_i32 : i32 to index
    %c0_29 = arith.constant 0 : index
    %c0_30 = arith.constant 0 : index
    %56 = vector.load %arg1[%55, %c0_29, %c0_30] : memref<8x36x2xf32, #tpu.memory_space<vmem>>, vector<1x36x2xf32>
    %57 = vector.shape_cast %56 : vector<1x36x2xf32> to vector<36x2xf32>
    %cst_31 = arith.constant dense<0.000000e+00> : vector<32x2xf32>
    %58 = tpu.matmul %3, %57, %cst_31 {dimension_numbers = #tpu.dot_dimension_numbers<[1], [0], [0], [1], [0, 0, 1, 1], [], []>} : vector<32x36xf32>, vector<36x2xf32>, vector<32x2xf32> -> vector<32x2xf32>
    %59 = vector.broadcast %4 : vector<32x1xf32> to vector<32x2xf32>
    %60 = arith.addf %58, %59 : vector<32x2xf32>
    %61 = arith.index_cast %c5_i32 : i32 to index
    %c0_32 = arith.constant 0 : index
    %c0_33 = arith.constant 0 : index
    %62 = vector.load %arg8[%61, %c0_32, %c0_33] : memref<8x32x2xf32, #tpu.memory_space<vmem>>, vector<1x32x2xf32>
    %63 = vector.shape_cast %62 : vector<1x32x2xf32> to vector<32x2xf32>
    %64 = vector.shape_cast %60 : vector<32x2xf32> to vector<1x32x2xf32>
    tpu.vector_store %arg8[%61, %c0_32, %c0_33], %64 {strides = array<i32>} : memref<8x32x2xf32, #tpu.memory_space<vmem>>, vector<1x32x2xf32>,
    %c6_i32 = arith.constant 6 : i32
    %65 = arith.index_cast %c6_i32 : i32 to index
    %c0_34 = arith.constant 0 : index
    %c0_35 = arith.constant 0 : index
    %66 = vector.load %arg1[%65, %c0_34, %c0_35] : memref<8x36x2xf32, #tpu.memory_space<vmem>>, vector<1x36x2xf32>
    %67 = vector.shape_cast %66 : vector<1x36x2xf32> to vector<36x2xf32>
    %cst_36 = arith.constant dense<0.000000e+00> : vector<32x2xf32>
    %68 = tpu.matmul %3, %67, %cst_36 {dimension_numbers = #tpu.dot_dimension_numbers<[1], [0], [0], [1], [0, 0, 1, 1], [], []>} : vector<32x36xf32>, vector<36x2xf32>, vector<32x2xf32> -> vector<32x2xf32>
    %69 = vector.broadcast %4 : vector<32x1xf32> to vector<32x2xf32>
    %70 = arith.addf %68, %69 : vector<32x2xf32>
    %71 = arith.index_cast %c6_i32 : i32 to index
    %c0_37 = arith.constant 0 : index
    %c0_38 = arith.constant 0 : index
    %72 = vector.load %arg8[%71, %c0_37, %c0_38] : memref<8x32x2xf32, #tpu.memory_space<vmem>>, vector<1x32x2xf32>
    %73 = vector.shape_cast %72 : vector<1x32x2xf32> to vector<32x2xf32>
    %74 = vector.shape_cast %70 : vector<32x2xf32> to vector<1x32x2xf32>
    tpu.vector_store %arg8[%71, %c0_37, %c0_38], %74 {strides = array<i32>} : memref<8x32x2xf32, #tpu.memory_space<vmem>>, vector<1x32x2xf32>,
    %c7_i32 = arith.constant 7 : i32
    %75 = arith.index_cast %c7_i32 : i32 to index
    %c0_39 = arith.constant 0 : index
    %c0_40 = arith.constant 0 : index
    %76 = vector.load %arg1[%75, %c0_39, %c0_40] : memref<8x36x2xf32, #tpu.memory_space<vmem>>, vector<1x36x2xf32>
    %77 = vector.shape_cast %76 : vector<1x36x2xf32> to vector<36x2xf32>
    %cst_41 = arith.constant dense<0.000000e+00> : vector<32x2xf32>
    %78 = tpu.matmul %3, %77, %cst_41 {dimension_numbers = #tpu.dot_dimension_numbers<[1], [0], [0], [1], [0, 0, 1, 1], [], []>} : vector<32x36xf32>, vector<36x2xf32>, vector<32x2xf32> -> vector<32x2xf32>
    %79 = vector.broadcast %4 : vector<32x1xf32> to vector<32x2xf32>
    %80 = arith.addf %78, %79 : vector<32x2xf32>
    %81 = arith.index_cast %c7_i32 : i32 to index
    %c0_42 = arith.constant 0 : index
    %c0_43 = arith.constant 0 : index
    %82 = vector.load %arg8[%81, %c0_42, %c0_43] : memref<8x32x2xf32, #tpu.memory_space<vmem>>, vector<1x32x2xf32>
    %83 = vector.shape_cast %82 : vector<1x32x2xf32> to vector<32x2xf32>
    %84 = vector.shape_cast %80 : vector<32x2xf32> to vector<1x32x2xf32>
    tpu.vector_store %arg8[%81, %c0_42, %c0_43], %84 {strides = array<i32>} : memref<8x32x2xf32, #tpu.memory_space<vmem>>, vector<1x32x2xf32>,
    %c8_i32 = arith.constant 8 : i32
    %c0_44 = arith.constant 0 : index
    %c0_45 = arith.constant 0 : index
    %85 = vector.load %arg3[%c0_44, %c0_45] : memref<32x8xf32, #tpu.memory_space<vmem>>, vector<32x8xf32>
    %86 = vector.extract_strided_slice %85 {offsets = [0, 0], sizes = [32, 1], strides = [1, 1]} : vector<32x8xf32> to vector<32x1xf32>
    %87 = vector.shape_cast %86 : vector<32x1xf32> to vector<32x1xf32>
    %88 = vector.broadcast %87 : vector<32x1xf32> to vector<32x2xf32>
    %89 = vector.extract_strided_slice %85 {offsets = [0, 1], sizes = [32, 1], strides = [1, 1]} : vector<32x8xf32> to vector<32x1xf32>
    %90 = vector.shape_cast %89 : vector<32x1xf32> to vector<32x1xf32>
    %91 = vector.broadcast %90 : vector<32x1xf32> to vector<32x2xf32>
    %92 = vector.extract_strided_slice %85 {offsets = [0, 2], sizes = [32, 1], strides = [1, 1]} : vector<32x8xf32> to vector<32x1xf32>
    %93 = vector.shape_cast %92 : vector<32x1xf32> to vector<32x1xf32>
    %94 = vector.broadcast %93 : vector<32x1xf32> to vector<32x2xf32>
    %95 = vector.extract_strided_slice %85 {offsets = [0, 3], sizes = [32, 1], strides = [1, 1]} : vector<32x8xf32> to vector<32x1xf32>
    %96 = vector.shape_cast %95 : vector<32x1xf32> to vector<32x1xf32>
    %97 = vector.broadcast %96 : vector<32x1xf32> to vector<32x2xf32>
    %98 = vector.extract_strided_slice %85 {offsets = [0, 4], sizes = [32, 1], strides = [1, 1]} : vector<32x8xf32> to vector<32x1xf32>
    %99 = vector.shape_cast %98 : vector<32x1xf32> to vector<32x1xf32>
    %100 = vector.broadcast %99 : vector<32x1xf32> to vector<32x2xf32>
    %c0_46 = arith.constant 0 : index
    %c0_47 = arith.constant 0 : index
    %101 = vector.load %arg9[%c0_46, %c0_47] : memref<8x2xf32, #tpu.memory_space<vmem>>, vector<8x2xf32>
    %c0_48 = arith.constant 0 : index
    %c0_49 = arith.constant 0 : index
    %102 = vector.load %arg10[%c0_48, %c0_49] : memref<8x2xf32, #tpu.memory_space<vmem>>, vector<8x2xf32>
    %c0_i32_50 = arith.constant 0 : i32
    %103 = arith.index_cast %c0_i32_50 : i32 to index
    %c0_51 = arith.constant 0 : index
    %c0_52 = arith.constant 0 : index
    %104 = vector.load %arg8[%103, %c0_51, %c0_52] : memref<8x32x2xf32, #tpu.memory_space<vmem>>, vector<1x32x2xf32>
    %105 = vector.shape_cast %104 : vector<1x32x2xf32> to vector<32x2xf32>
    %106 = vector.extract_strided_slice %101 {offsets = [0, 0], sizes = [1, 2], strides = [1, 1]} : vector<8x2xf32> to vector<1x2xf32>
    %107 = vector.broadcast %106 : vector<1x2xf32> to vector<32x2xf32>
    %108 = arith.mulf %88, %107 : vector<32x2xf32>
    %109 = arith.addf %105, %108 : vector<32x2xf32>
    %110 = vector.extract_strided_slice %101 {offsets = [1, 0], sizes = [1, 2], strides = [1, 1]} : vector<8x2xf32> to vector<1x2xf32>
    %111 = vector.broadcast %110 : vector<1x2xf32> to vector<32x2xf32>
    %112 = arith.mulf %91, %111 : vector<32x2xf32>
    %113 = arith.addf %109, %112 : vector<32x2xf32>
    %114 = vector.extract_strided_slice %101 {offsets = [2, 0], sizes = [1, 2], strides = [1, 1]} : vector<8x2xf32> to vector<1x2xf32>
    %115 = vector.broadcast %114 : vector<1x2xf32> to vector<32x2xf32>
    %116 = arith.mulf %94, %115 : vector<32x2xf32>
    %117 = arith.addf %113, %116 : vector<32x2xf32>
    %118 = vector.extract_strided_slice %101 {offsets = [3, 0], sizes = [1, 2], strides = [1, 1]} : vector<8x2xf32> to vector<1x2xf32>
    %119 = vector.broadcast %118 : vector<1x2xf32> to vector<32x2xf32>
    %120 = arith.mulf %97, %119 : vector<32x2xf32>
    %121 = arith.addf %117, %120 : vector<32x2xf32>
    %122 = vector.extract_strided_slice %101 {offsets = [4, 0], sizes = [1, 2], strides = [1, 1]} : vector<8x2xf32> to vector<1x2xf32>
    %123 = vector.broadcast %122 : vector<1x2xf32> to vector<32x2xf32>
    %124 = arith.mulf %100, %123 : vector<32x2xf32>
    %125 = arith.addf %121, %124 : vector<32x2xf32>
    %126 = vector.extract_strided_slice %125 {offsets = [0, 0], sizes = [8, 2], strides = [1, 1]} : vector<32x2xf32> to vector<8x2xf32>
    %127 = arith.negf %126 : vector<8x2xf32>
    %128 = math.exp %127 : vector<8x2xf32>
    %cst_53 = arith.constant 1.000000e+00 : f32
    %129 = vector.broadcast %cst_53 : f32 to vector<8x2xf32>
    %130 = arith.addf %129, %128 : vector<8x2xf32>
    %131 = arith.divf %129, %130 : vector<8x2xf32>
    %132 = vector.extract_strided_slice %125 {offsets = [8, 0], sizes = [8, 2], strides = [1, 1]} : vector<32x2xf32> to vector<8x2xf32>
    %133 = arith.negf %132 : vector<8x2xf32>
    %134 = math.exp %133 : vector<8x2xf32>
    %cst_54 = arith.constant 1.000000e+00 : f32
    %135 = vector.broadcast %cst_54 : f32 to vector<8x2xf32>
    %136 = arith.addf %135, %134 : vector<8x2xf32>
    %137 = arith.divf %135, %136 : vector<8x2xf32>
    %138 = vector.extract_strided_slice %125 {offsets = [16, 0], sizes = [8, 2], strides = [1, 1]} : vector<32x2xf32> to vector<8x2xf32>
    %139 = math.tanh %138 : vector<8x2xf32>
    %140 = vector.extract_strided_slice %125 {offsets = [24, 0], sizes = [8, 2], strides = [1, 1]} : vector<32x2xf32> to vector<8x2xf32>
    %141 = arith.negf %140 : vector<8x2xf32>
    %142 = math.exp %141 : vector<8x2xf32>
    %cst_55 = arith.constant 1.000000e+00 : f32
    %143 = vector.broadcast %cst_55 : f32 to vector<8x2xf32>
    %144 = arith.addf %143, %142 : vector<8x2xf32>
    %145 = arith.divf %143, %144 : vector<8x2xf32>
    %146 = arith.mulf %137, %102 : vector<8x2xf32>
    %147 = arith.mulf %131, %139 : vector<8x2xf32>
    %148 = arith.addf %146, %147 : vector<8x2xf32>
    %149 = math.tanh %148 : vector<8x2xf32>
    %150 = arith.mulf %145, %149 : vector<8x2xf32>
    %c1_i32_56 = arith.constant 1 : i32
    %151 = arith.index_cast %c1_i32_56 : i32 to index
    %c0_57 = arith.constant 0 : index
    %c0_58 = arith.constant 0 : index
    %152 = vector.load %arg8[%151, %c0_57, %c0_58] : memref<8x32x2xf32, #tpu.memory_space<vmem>>, vector<1x32x2xf32>
    %153 = vector.shape_cast %152 : vector<1x32x2xf32> to vector<32x2xf32>
    %154 = vector.extract_strided_slice %150 {offsets = [0, 0], sizes = [1, 2], strides = [1, 1]} : vector<8x2xf32> to vector<1x2xf32>
    %155 = vector.broadcast %154 : vector<1x2xf32> to vector<32x2xf32>
    %156 = arith.mulf %88, %155 : vector<32x2xf32>
    %157 = arith.addf %153, %156 : vector<32x2xf32>
    %158 = vector.extract_strided_slice %150 {offsets = [1, 0], sizes = [1, 2], strides = [1, 1]} : vector<8x2xf32> to vector<1x2xf32>
    %159 = vector.broadcast %158 : vector<1x2xf32> to vector<32x2xf32>
    %160 = arith.mulf %91, %159 : vector<32x2xf32>
    %161 = arith.addf %157, %160 : vector<32x2xf32>
    %162 = vector.extract_strided_slice %150 {offsets = [2, 0], sizes = [1, 2], strides = [1, 1]} : vector<8x2xf32> to vector<1x2xf32>
    %163 = vector.broadcast %162 : vector<1x2xf32> to vector<32x2xf32>
    %164 = arith.mulf %94, %163 : vector<32x2xf32>
    %165 = arith.addf %161, %164 : vector<32x2xf32>
    %166 = vector.extract_strided_slice %150 {offsets = [3, 0], sizes = [1, 2], strides = [1, 1]} : vector<8x2xf32> to vector<1x2xf32>
    %167 = vector.broadcast %166 : vector<1x2xf32> to vector<32x2xf32>
    %168 = arith.mulf %97, %167 : vector<32x2xf32>
    %169 = arith.addf %165, %168 : vector<32x2xf32>
    %170 = vector.extract_strided_slice %150 {offsets = [4, 0], sizes = [1, 2], strides = [1, 1]} : vector<8x2xf32> to vector<1x2xf32>
    %171 = vector.broadcast %170 : vector<1x2xf32> to vector<32x2xf32>
    %172 = arith.mulf %100, %171 : vector<32x2xf32>
    %173 = arith.addf %169, %172 : vector<32x2xf32>
    %174 = vector.extract_strided_slice %173 {offsets = [0, 0], sizes = [8, 2], strides = [1, 1]} : vector<32x2xf32> to vector<8x2xf32>
    %175 = arith.negf %174 : vector<8x2xf32>
    %176 = math.exp %175 : vector<8x2xf32>
    %cst_59 = arith.constant 1.000000e+00 : f32
    %177 = vector.broadcast %cst_59 : f32 to vector<8x2xf32>
    %178 = arith.addf %177, %176 : vector<8x2xf32>
    %179 = arith.divf %177, %178 : vector<8x2xf32>
    %180 = vector.extract_strided_slice %173 {offsets = [8, 0], sizes = [8, 2], strides = [1, 1]} : vector<32x2xf32> to vector<8x2xf32>
    %181 = arith.negf %180 : vector<8x2xf32>
    %182 = math.exp %181 : vector<8x2xf32>
    %cst_60 = arith.constant 1.000000e+00 : f32
    %183 = vector.broadcast %cst_60 : f32 to vector<8x2xf32>
    %184 = arith.addf %183, %182 : vector<8x2xf32>
    %185 = arith.divf %183, %184 : vector<8x2xf32>
    %186 = vector.extract_strided_slice %173 {offsets = [16, 0], sizes = [8, 2], strides = [1, 1]} : vector<32x2xf32> to vector<8x2xf32>
    %187 = math.tanh %186 : vector<8x2xf32>
    %188 = vector.extract_strided_slice %173 {offsets = [24, 0], sizes = [8, 2], strides = [1, 1]} : vector<32x2xf32> to vector<8x2xf32>
    %189 = arith.negf %188 : vector<8x2xf32>
    %190 = math.exp %189 : vector<8x2xf32>
    %cst_61 = arith.constant 1.000000e+00 : f32
    %191 = vector.broadcast %cst_61 : f32 to vector<8x2xf32>
    %192 = arith.addf %191, %190 : vector<8x2xf32>
    %193 = arith.divf %191, %192 : vector<8x2xf32>
    %194 = arith.mulf %185, %148 : vector<8x2xf32>
    %195 = arith.mulf %179, %187 : vector<8x2xf32>
    %196 = arith.addf %194, %195 : vector<8x2xf32>
    %197 = math.tanh %196 : vector<8x2xf32>
    %198 = arith.mulf %193, %197 : vector<8x2xf32>
    %c2_i32_62 = arith.constant 2 : i32
    %199 = arith.index_cast %c2_i32_62 : i32 to index
    %c0_63 = arith.constant 0 : index
    %c0_64 = arith.constant 0 : index
    %200 = vector.load %arg8[%199, %c0_63, %c0_64] : memref<8x32x2xf32, #tpu.memory_space<vmem>>, vector<1x32x2xf32>
    %201 = vector.shape_cast %200 : vector<1x32x2xf32> to vector<32x2xf32>
    %202 = vector.extract_strided_slice %198 {offsets = [0, 0], sizes = [1, 2], strides = [1, 1]} : vector<8x2xf32> to vector<1x2xf32>
    %203 = vector.broadcast %202 : vector<1x2xf32> to vector<32x2xf32>
    %204 = arith.mulf %88, %203 : vector<32x2xf32>
    %205 = arith.addf %201, %204 : vector<32x2xf32>
    %206 = vector.extract_strided_slice %198 {offsets = [1, 0], sizes = [1, 2], strides = [1, 1]} : vector<8x2xf32> to vector<1x2xf32>
    %207 = vector.broadcast %206 : vector<1x2xf32> to vector<32x2xf32>
    %208 = arith.mulf %91, %207 : vector<32x2xf32>
    %209 = arith.addf %205, %208 : vector<32x2xf32>
    %210 = vector.extract_strided_slice %198 {offsets = [2, 0], sizes = [1, 2], strides = [1, 1]} : vector<8x2xf32> to vector<1x2xf32>
    %211 = vector.broadcast %210 : vector<1x2xf32> to vector<32x2xf32>
    %212 = arith.mulf %94, %211 : vector<32x2xf32>
    %213 = arith.addf %209, %212 : vector<32x2xf32>
    %214 = vector.extract_strided_slice %198 {offsets = [3, 0], sizes = [1, 2], strides = [1, 1]} : vector<8x2xf32> to vector<1x2xf32>
    %215 = vector.broadcast %214 : vector<1x2xf32> to vector<32x2xf32>
    %216 = arith.mulf %97, %215 : vector<32x2xf32>
    %217 = arith.addf %213, %216 : vector<32x2xf32>
    %218 = vector.extract_strided_slice %198 {offsets = [4, 0], sizes = [1, 2], strides = [1, 1]} : vector<8x2xf32> to vector<1x2xf32>
    %219 = vector.broadcast %218 : vector<1x2xf32> to vector<32x2xf32>
    %220 = arith.mulf %100, %219 : vector<32x2xf32>
    %221 = arith.addf %217, %220 : vector<32x2xf32>
    %222 = vector.extract_strided_slice %221 {offsets = [0, 0], sizes = [8, 2], strides = [1, 1]} : vector<32x2xf32> to vector<8x2xf32>
    %223 = arith.negf %222 : vector<8x2xf32>
    %224 = math.exp %223 : vector<8x2xf32>
    %cst_65 = arith.constant 1.000000e+00 : f32
    %225 = vector.broadcast %cst_65 : f32 to vector<8x2xf32>
    %226 = arith.addf %225, %224 : vector<8x2xf32>
    %227 = arith.divf %225, %226 : vector<8x2xf32>
    %228 = vector.extract_strided_slice %221 {offsets = [8, 0], sizes = [8, 2], strides = [1, 1]} : vector<32x2xf32> to vector<8x2xf32>
    %229 = arith.negf %228 : vector<8x2xf32>
    %230 = math.exp %229 : vector<8x2xf32>
    %cst_66 = arith.constant 1.000000e+00 : f32
    %231 = vector.broadcast %cst_66 : f32 to vector<8x2xf32>
    %232 = arith.addf %231, %230 : vector<8x2xf32>
    %233 = arith.divf %231, %232 : vector<8x2xf32>
    %234 = vector.extract_strided_slice %221 {offsets = [16, 0], sizes = [8, 2], strides = [1, 1]} : vector<32x2xf32> to vector<8x2xf32>
    %235 = math.tanh %234 : vector<8x2xf32>
    %236 = vector.extract_strided_slice %221 {offsets = [24, 0], sizes = [8, 2], strides = [1, 1]} : vector<32x2xf32> to vector<8x2xf32>
    %237 = arith.negf %236 : vector<8x2xf32>
    %238 = math.exp %237 : vector<8x2xf32>
    %cst_67 = arith.constant 1.000000e+00 : f32
    %239 = vector.broadcast %cst_67 : f32 to vector<8x2xf32>
    %240 = arith.addf %239, %238 : vector<8x2xf32>
    %241 = arith.divf %239, %240 : vector<8x2xf32>
    %242 = arith.mulf %233, %196 : vector<8x2xf32>
    %243 = arith.mulf %227, %235 : vector<8x2xf32>
    %244 = arith.addf %242, %243 : vector<8x2xf32>
    %245 = math.tanh %244 : vector<8x2xf32>
    %246 = arith.mulf %241, %245 : vector<8x2xf32>
    %c3_i32_68 = arith.constant 3 : i32
    %247 = arith.index_cast %c3_i32_68 : i32 to index
    %c0_69 = arith.constant 0 : index
    %c0_70 = arith.constant 0 : index
    %248 = vector.load %arg8[%247, %c0_69, %c0_70] : memref<8x32x2xf32, #tpu.memory_space<vmem>>, vector<1x32x2xf32>
    %249 = vector.shape_cast %248 : vector<1x32x2xf32> to vector<32x2xf32>
    %250 = vector.extract_strided_slice %246 {offsets = [0, 0], sizes = [1, 2], strides = [1, 1]} : vector<8x2xf32> to vector<1x2xf32>
    %251 = vector.broadcast %250 : vector<1x2xf32> to vector<32x2xf32>
    %252 = arith.mulf %88, %251 : vector<32x2xf32>
    %253 = arith.addf %249, %252 : vector<32x2xf32>
    %254 = vector.extract_strided_slice %246 {offsets = [1, 0], sizes = [1, 2], strides = [1, 1]} : vector<8x2xf32> to vector<1x2xf32>
    %255 = vector.broadcast %254 : vector<1x2xf32> to vector<32x2xf32>
    %256 = arith.mulf %91, %255 : vector<32x2xf32>
    %257 = arith.addf %253, %256 : vector<32x2xf32>
    %258 = vector.extract_strided_slice %246 {offsets = [2, 0], sizes = [1, 2], strides = [1, 1]} : vector<8x2xf32> to vector<1x2xf32>
    %259 = vector.broadcast %258 : vector<1x2xf32> to vector<32x2xf32>
    %260 = arith.mulf %94, %259 : vector<32x2xf32>
    %261 = arith.addf %257, %260 : vector<32x2xf32>
    %262 = vector.extract_strided_slice %246 {offsets = [3, 0], sizes = [1, 2], strides = [1, 1]} : vector<8x2xf32> to vector<1x2xf32>
    %263 = vector.broadcast %262 : vector<1x2xf32> to vector<32x2xf32>
    %264 = arith.mulf %97, %263 : vector<32x2xf32>
    %265 = arith.addf %261, %264 : vector<32x2xf32>
    %266 = vector.extract_strided_slice %246 {offsets = [4, 0], sizes = [1, 2], strides = [1, 1]} : vector<8x2xf32> to vector<1x2xf32>
    %267 = vector.broadcast %266 : vector<1x2xf32> to vector<32x2xf32>
    %268 = arith.mulf %100, %267 : vector<32x2xf32>
    %269 = arith.addf %265, %268 : vector<32x2xf32>
    %270 = vector.extract_strided_slice %269 {offsets = [0, 0], sizes = [8, 2], strides = [1, 1]} : vector<32x2xf32> to vector<8x2xf32>
    %271 = arith.negf %270 : vector<8x2xf32>
    %272 = math.exp %271 : vector<8x2xf32>
    %cst_71 = arith.constant 1.000000e+00 : f32
    %273 = vector.broadcast %cst_71 : f32 to vector<8x2xf32>
    %274 = arith.addf %273, %272 : vector<8x2xf32>
    %275 = arith.divf %273, %274 : vector<8x2xf32>
    %276 = vector.extract_strided_slice %269 {offsets = [8, 0], sizes = [8, 2], strides = [1, 1]} : vector<32x2xf32> to vector<8x2xf32>
    %277 = arith.negf %276 : vector<8x2xf32>
    %278 = math.exp %277 : vector<8x2xf32>
    %cst_72 = arith.constant 1.000000e+00 : f32
    %279 = vector.broadcast %cst_72 : f32 to vector<8x2xf32>
    %280 = arith.addf %279, %278 : vector<8x2xf32>
    %281 = arith.divf %279, %280 : vector<8x2xf32>
    %282 = vector.extract_strided_slice %269 {offsets = [16, 0], sizes = [8, 2], strides = [1, 1]} : vector<32x2xf32> to vector<8x2xf32>
    %283 = math.tanh %282 : vector<8x2xf32>
    %284 = vector.extract_strided_slice %269 {offsets = [24, 0], sizes = [8, 2], strides = [1, 1]} : vector<32x2xf32> to vector<8x2xf32>
    %285 = arith.negf %284 : vector<8x2xf32>
    %286 = math.exp %285 : vector<8x2xf32>
    %cst_73 = arith.constant 1.000000e+00 : f32
    %287 = vector.broadcast %cst_73 : f32 to vector<8x2xf32>
    %288 = arith.addf %287, %286 : vector<8x2xf32>
    %289 = arith.divf %287, %288 : vector<8x2xf32>
    %290 = arith.mulf %281, %244 : vector<8x2xf32>
    %291 = arith.mulf %275, %283 : vector<8x2xf32>
    %292 = arith.addf %290, %291 : vector<8x2xf32>
    %293 = math.tanh %292 : vector<8x2xf32>
    %294 = arith.mulf %289, %293 : vector<8x2xf32>
    %c4_i32_74 = arith.constant 4 : i32
    %295 = arith.index_cast %c4_i32_74 : i32 to index
    %c0_75 = arith.constant 0 : index
    %c0_76 = arith.constant 0 : index
    %296 = vector.load %arg8[%295, %c0_75, %c0_76] : memref<8x32x2xf32, #tpu.memory_space<vmem>>, vector<1x32x2xf32>
    %297 = vector.shape_cast %296 : vector<1x32x2xf32> to vector<32x2xf32>
    %298 = vector.extract_strided_slice %294 {offsets = [0, 0], sizes = [1, 2], strides = [1, 1]} : vector<8x2xf32> to vector<1x2xf32>
    %299 = vector.broadcast %298 : vector<1x2xf32> to vector<32x2xf32>
    %300 = arith.mulf %88, %299 : vector<32x2xf32>
    %301 = arith.addf %297, %300 : vector<32x2xf32>
    %302 = vector.extract_strided_slice %294 {offsets = [1, 0], sizes = [1, 2], strides = [1, 1]} : vector<8x2xf32> to vector<1x2xf32>
    %303 = vector.broadcast %302 : vector<1x2xf32> to vector<32x2xf32>
    %304 = arith.mulf %91, %303 : vector<32x2xf32>
    %305 = arith.addf %301, %304 : vector<32x2xf32>
    %306 = vector.extract_strided_slice %294 {offsets = [2, 0], sizes = [1, 2], strides = [1, 1]} : vector<8x2xf32> to vector<1x2xf32>
    %307 = vector.broadcast %306 : vector<1x2xf32> to vector<32x2xf32>
    %308 = arith.mulf %94, %307 : vector<32x2xf32>
    %309 = arith.addf %305, %308 : vector<32x2xf32>
    %310 = vector.extract_strided_slice %294 {offsets = [3, 0], sizes = [1, 2], strides = [1, 1]} : vector<8x2xf32> to vector<1x2xf32>
    %311 = vector.broadcast %310 : vector<1x2xf32> to vector<32x2xf32>
    %312 = arith.mulf %97, %311 : vector<32x2xf32>
    %313 = arith.addf %309, %312 : vector<32x2xf32>
    %314 = vector.extract_strided_slice %294 {offsets = [4, 0], sizes = [1, 2], strides = [1, 1]} : vector<8x2xf32> to vector<1x2xf32>
    %315 = vector.broadcast %314 : vector<1x2xf32> to vector<32x2xf32>
    %316 = arith.mulf %100, %315 : vector<32x2xf32>
    %317 = arith.addf %313, %316 : vector<32x2xf32>
    %318 = vector.extract_strided_slice %317 {offsets = [0, 0], sizes = [8, 2], strides = [1, 1]} : vector<32x2xf32> to vector<8x2xf32>
    %319 = arith.negf %318 : vector<8x2xf32>
    %320 = math.exp %319 : vector<8x2xf32>
    %cst_77 = arith.constant 1.000000e+00 : f32
    %321 = vector.broadcast %cst_77 : f32 to vector<8x2xf32>
    %322 = arith.addf %321, %320 : vector<8x2xf32>
    %323 = arith.divf %321, %322 : vector<8x2xf32>
    %324 = vector.extract_strided_slice %317 {offsets = [8, 0], sizes = [8, 2], strides = [1, 1]} : vector<32x2xf32> to vector<8x2xf32>
    %325 = arith.negf %324 : vector<8x2xf32>
    %326 = math.exp %325 : vector<8x2xf32>
    %cst_78 = arith.constant 1.000000e+00 : f32
    %327 = vector.broadcast %cst_78 : f32 to vector<8x2xf32>
    %328 = arith.addf %327, %326 : vector<8x2xf32>
    %329 = arith.divf %327, %328 : vector<8x2xf32>
    %330 = vector.extract_strided_slice %317 {offsets = [16, 0], sizes = [8, 2], strides = [1, 1]} : vector<32x2xf32> to vector<8x2xf32>
    %331 = math.tanh %330 : vector<8x2xf32>
    %332 = vector.extract_strided_slice %317 {offsets = [24, 0], sizes = [8, 2], strides = [1, 1]} : vector<32x2xf32> to vector<8x2xf32>
    %333 = arith.negf %332 : vector<8x2xf32>
    %334 = math.exp %333 : vector<8x2xf32>
    %cst_79 = arith.constant 1.000000e+00 : f32
    %335 = vector.broadcast %cst_79 : f32 to vector<8x2xf32>
    %336 = arith.addf %335, %334 : vector<8x2xf32>
    %337 = arith.divf %335, %336 : vector<8x2xf32>
    %338 = arith.mulf %329, %292 : vector<8x2xf32>
    %339 = arith.mulf %323, %331 : vector<8x2xf32>
    %340 = arith.addf %338, %339 : vector<8x2xf32>
    %341 = math.tanh %340 : vector<8x2xf32>
    %342 = arith.mulf %337, %341 : vector<8x2xf32>
    %c5_i32_80 = arith.constant 5 : i32
    %343 = arith.index_cast %c5_i32_80 : i32 to index
    %c0_81 = arith.constant 0 : index
    %c0_82 = arith.constant 0 : index
    %344 = vector.load %arg8[%343, %c0_81, %c0_82] : memref<8x32x2xf32, #tpu.memory_space<vmem>>, vector<1x32x2xf32>
    %345 = vector.shape_cast %344 : vector<1x32x2xf32> to vector<32x2xf32>
    %346 = vector.extract_strided_slice %342 {offsets = [0, 0], sizes = [1, 2], strides = [1, 1]} : vector<8x2xf32> to vector<1x2xf32>
    %347 = vector.broadcast %346 : vector<1x2xf32> to vector<32x2xf32>
    %348 = arith.mulf %88, %347 : vector<32x2xf32>
    %349 = arith.addf %345, %348 : vector<32x2xf32>
    %350 = vector.extract_strided_slice %342 {offsets = [1, 0], sizes = [1, 2], strides = [1, 1]} : vector<8x2xf32> to vector<1x2xf32>
    %351 = vector.broadcast %350 : vector<1x2xf32> to vector<32x2xf32>
    %352 = arith.mulf %91, %351 : vector<32x2xf32>
    %353 = arith.addf %349, %352 : vector<32x2xf32>
    %354 = vector.extract_strided_slice %342 {offsets = [2, 0], sizes = [1, 2], strides = [1, 1]} : vector<8x2xf32> to vector<1x2xf32>
    %355 = vector.broadcast %354 : vector<1x2xf32> to vector<32x2xf32>
    %356 = arith.mulf %94, %355 : vector<32x2xf32>
    %357 = arith.addf %353, %356 : vector<32x2xf32>
    %358 = vector.extract_strided_slice %342 {offsets = [3, 0], sizes = [1, 2], strides = [1, 1]} : vector<8x2xf32> to vector<1x2xf32>
    %359 = vector.broadcast %358 : vector<1x2xf32> to vector<32x2xf32>
    %360 = arith.mulf %97, %359 : vector<32x2xf32>
    %361 = arith.addf %357, %360 : vector<32x2xf32>
    %362 = vector.extract_strided_slice %342 {offsets = [4, 0], sizes = [1, 2], strides = [1, 1]} : vector<8x2xf32> to vector<1x2xf32>
    %363 = vector.broadcast %362 : vector<1x2xf32> to vector<32x2xf32>
    %364 = arith.mulf %100, %363 : vector<32x2xf32>
    %365 = arith.addf %361, %364 : vector<32x2xf32>
    %366 = vector.extract_strided_slice %365 {offsets = [0, 0], sizes = [8, 2], strides = [1, 1]} : vector<32x2xf32> to vector<8x2xf32>
    %367 = arith.negf %366 : vector<8x2xf32>
    %368 = math.exp %367 : vector<8x2xf32>
    %cst_83 = arith.constant 1.000000e+00 : f32
    %369 = vector.broadcast %cst_83 : f32 to vector<8x2xf32>
    %370 = arith.addf %369, %368 : vector<8x2xf32>
    %371 = arith.divf %369, %370 : vector<8x2xf32>
    %372 = vector.extract_strided_slice %365 {offsets = [8, 0], sizes = [8, 2], strides = [1, 1]} : vector<32x2xf32> to vector<8x2xf32>
    %373 = arith.negf %372 : vector<8x2xf32>
    %374 = math.exp %373 : vector<8x2xf32>
    %cst_84 = arith.constant 1.000000e+00 : f32
    %375 = vector.broadcast %cst_84 : f32 to vector<8x2xf32>
    %376 = arith.addf %375, %374 : vector<8x2xf32>
    %377 = arith.divf %375, %376 : vector<8x2xf32>
    %378 = vector.extract_strided_slice %365 {offsets = [16, 0], sizes = [8, 2], strides = [1, 1]} : vector<32x2xf32> to vector<8x2xf32>
    %379 = math.tanh %378 : vector<8x2xf32>
    %380 = vector.extract_strided_slice %365 {offsets = [24, 0], sizes = [8, 2], strides = [1, 1]} : vector<32x2xf32> to vector<8x2xf32>
    %381 = arith.negf %380 : vector<8x2xf32>
    %382 = math.exp %381 : vector<8x2xf32>
    %cst_85 = arith.constant 1.000000e+00 : f32
    %383 = vector.broadcast %cst_85 : f32 to vector<8x2xf32>
    %384 = arith.addf %383, %382 : vector<8x2xf32>
    %385 = arith.divf %383, %384 : vector<8x2xf32>
    %386 = arith.mulf %377, %340 : vector<8x2xf32>
    %387 = arith.mulf %371, %379 : vector<8x2xf32>
    %388 = arith.addf %386, %387 : vector<8x2xf32>
    %389 = math.tanh %388 : vector<8x2xf32>
    %390 = arith.mulf %385, %389 : vector<8x2xf32>
    %c6_i32_86 = arith.constant 6 : i32
    %391 = arith.index_cast %c6_i32_86 : i32 to index
    %c0_87 = arith.constant 0 : index
    %c0_88 = arith.constant 0 : index
    %392 = vector.load %arg8[%391, %c0_87, %c0_88] : memref<8x32x2xf32, #tpu.memory_space<vmem>>, vector<1x32x2xf32>
    %393 = vector.shape_cast %392 : vector<1x32x2xf32> to vector<32x2xf32>
    %394 = vector.extract_strided_slice %390 {offsets = [0, 0], sizes = [1, 2], strides = [1, 1]} : vector<8x2xf32> to vector<1x2xf32>
    %395 = vector.broadcast %394 : vector<1x2xf32> to vector<32x2xf32>
    %396 = arith.mulf %88, %395 : vector<32x2xf32>
    %397 = arith.addf %393, %396 : vector<32x2xf32>
    %398 = vector.extract_strided_slice %390 {offsets = [1, 0], sizes = [1, 2], strides = [1, 1]} : vector<8x2xf32> to vector<1x2xf32>
    %399 = vector.broadcast %398 : vector<1x2xf32> to vector<32x2xf32>
    %400 = arith.mulf %91, %399 : vector<32x2xf32>
    %401 = arith.addf %397, %400 : vector<32x2xf32>
    %402 = vector.extract_strided_slice %390 {offsets = [2, 0], sizes = [1, 2], strides = [1, 1]} : vector<8x2xf32> to vector<1x2xf32>
    %403 = vector.broadcast %402 : vector<1x2xf32> to vector<32x2xf32>
    %404 = arith.mulf %94, %403 : vector<32x2xf32>
    %405 = arith.addf %401, %404 : vector<32x2xf32>
    %406 = vector.extract_strided_slice %390 {offsets = [3, 0], sizes = [1, 2], strides = [1, 1]} : vector<8x2xf32> to vector<1x2xf32>
    %407 = vector.broadcast %406 : vector<1x2xf32> to vector<32x2xf32>
    %408 = arith.mulf %97, %407 : vector<32x2xf32>
    %409 = arith.addf %405, %408 : vector<32x2xf32>
    %410 = vector.extract_strided_slice %390 {offsets = [4, 0], sizes = [1, 2], strides = [1, 1]} : vector<8x2xf32> to vector<1x2xf32>
    %411 = vector.broadcast %410 : vector<1x2xf32> to vector<32x2xf32>
    %412 = arith.mulf %100, %411 : vector<32x2xf32>
    %413 = arith.addf %409, %412 : vector<32x2xf32>
    %414 = vector.extract_strided_slice %413 {offsets = [0, 0], sizes = [8, 2], strides = [1, 1]} : vector<32x2xf32> to vector<8x2xf32>
    %415 = arith.negf %414 : vector<8x2xf32>
    %416 = math.exp %415 : vector<8x2xf32>
    %cst_89 = arith.constant 1.000000e+00 : f32
    %417 = vector.broadcast %cst_89 : f32 to vector<8x2xf32>
    %418 = arith.addf %417, %416 : vector<8x2xf32>
    %419 = arith.divf %417, %418 : vector<8x2xf32>
    %420 = vector.extract_strided_slice %413 {offsets = [8, 0], sizes = [8, 2], strides = [1, 1]} : vector<32x2xf32> to vector<8x2xf32>
    %421 = arith.negf %420 : vector<8x2xf32>
    %422 = math.exp %421 : vector<8x2xf32>
    %cst_90 = arith.constant 1.000000e+00 : f32
    %423 = vector.broadcast %cst_90 : f32 to vector<8x2xf32>
    %424 = arith.addf %423, %422 : vector<8x2xf32>
    %425 = arith.divf %423, %424 : vector<8x2xf32>
    %426 = vector.extract_strided_slice %413 {offsets = [16, 0], sizes = [8, 2], strides = [1, 1]} : vector<32x2xf32> to vector<8x2xf32>
    %427 = math.tanh %426 : vector<8x2xf32>
    %428 = vector.extract_strided_slice %413 {offsets = [24, 0], sizes = [8, 2], strides = [1, 1]} : vector<32x2xf32> to vector<8x2xf32>
    %429 = arith.negf %428 : vector<8x2xf32>
    %430 = math.exp %429 : vector<8x2xf32>
    %cst_91 = arith.constant 1.000000e+00 : f32
    %431 = vector.broadcast %cst_91 : f32 to vector<8x2xf32>
    %432 = arith.addf %431, %430 : vector<8x2xf32>
    %433 = arith.divf %431, %432 : vector<8x2xf32>
    %434 = arith.mulf %425, %388 : vector<8x2xf32>
    %435 = arith.mulf %419, %427 : vector<8x2xf32>
    %436 = arith.addf %434, %435 : vector<8x2xf32>
    %437 = math.tanh %436 : vector<8x2xf32>
    %438 = arith.mulf %433, %437 : vector<8x2xf32>
    %c7_i32_92 = arith.constant 7 : i32
    %439 = arith.index_cast %c7_i32_92 : i32 to index
    %c0_93 = arith.constant 0 : index
    %c0_94 = arith.constant 0 : index
    %440 = vector.load %arg8[%439, %c0_93, %c0_94] : memref<8x32x2xf32, #tpu.memory_space<vmem>>, vector<1x32x2xf32>
    %441 = vector.shape_cast %440 : vector<1x32x2xf32> to vector<32x2xf32>
    %442 = vector.extract_strided_slice %438 {offsets = [0, 0], sizes = [1, 2], strides = [1, 1]} : vector<8x2xf32> to vector<1x2xf32>
    %443 = vector.broadcast %442 : vector<1x2xf32> to vector<32x2xf32>
    %444 = arith.mulf %88, %443 : vector<32x2xf32>
    %445 = arith.addf %441, %444 : vector<32x2xf32>
    %446 = vector.extract_strided_slice %438 {offsets = [1, 0], sizes = [1, 2], strides = [1, 1]} : vector<8x2xf32> to vector<1x2xf32>
    %447 = vector.broadcast %446 : vector<1x2xf32> to vector<32x2xf32>
    %448 = arith.mulf %91, %447 : vector<32x2xf32>
    %449 = arith.addf %445, %448 : vector<32x2xf32>
    %450 = vector.extract_strided_slice %438 {offsets = [2, 0], sizes = [1, 2], strides = [1, 1]} : vector<8x2xf32> to vector<1x2xf32>
    %451 = vector.broadcast %450 : vector<1x2xf32> to vector<32x2xf32>
    %452 = arith.mulf %94, %451 : vector<32x2xf32>
    %453 = arith.addf %449, %452 : vector<32x2xf32>
    %454 = vector.extract_strided_slice %438 {offsets = [3, 0], sizes = [1, 2], strides = [1, 1]} : vector<8x2xf32> to vector<1x2xf32>
    %455 = vector.broadcast %454 : vector<1x2xf32> to vector<32x2xf32>
    %456 = arith.mulf %97, %455 : vector<32x2xf32>
    %457 = arith.addf %453, %456 : vector<32x2xf32>
    %458 = vector.extract_strided_slice %438 {offsets = [4, 0], sizes = [1, 2], strides = [1, 1]} : vector<8x2xf32> to vector<1x2xf32>
    %459 = vector.broadcast %458 : vector<1x2xf32> to vector<32x2xf32>
    %460 = arith.mulf %100, %459 : vector<32x2xf32>
    %461 = arith.addf %457, %460 : vector<32x2xf32>
    %462 = vector.extract_strided_slice %461 {offsets = [0, 0], sizes = [8, 2], strides = [1, 1]} : vector<32x2xf32> to vector<8x2xf32>
    %463 = arith.negf %462 : vector<8x2xf32>
    %464 = math.exp %463 : vector<8x2xf32>
    %cst_95 = arith.constant 1.000000e+00 : f32
    %465 = vector.broadcast %cst_95 : f32 to vector<8x2xf32>
    %466 = arith.addf %465, %464 : vector<8x2xf32>
    %467 = arith.divf %465, %466 : vector<8x2xf32>
    %468 = vector.extract_strided_slice %461 {offsets = [8, 0], sizes = [8, 2], strides = [1, 1]} : vector<32x2xf32> to vector<8x2xf32>
    %469 = arith.negf %468 : vector<8x2xf32>
    %470 = math.exp %469 : vector<8x2xf32>
    %cst_96 = arith.constant 1.000000e+00 : f32
    %471 = vector.broadcast %cst_96 : f32 to vector<8x2xf32>
    %472 = arith.addf %471, %470 : vector<8x2xf32>
    %473 = arith.divf %471, %472 : vector<8x2xf32>
    %474 = vector.extract_strided_slice %461 {offsets = [16, 0], sizes = [8, 2], strides = [1, 1]} : vector<32x2xf32> to vector<8x2xf32>
    %475 = math.tanh %474 : vector<8x2xf32>
    %476 = vector.extract_strided_slice %461 {offsets = [24, 0], sizes = [8, 2], strides = [1, 1]} : vector<32x2xf32> to vector<8x2xf32>
    %477 = arith.negf %476 : vector<8x2xf32>
    %478 = math.exp %477 : vector<8x2xf32>
    %cst_97 = arith.constant 1.000000e+00 : f32
    %479 = vector.broadcast %cst_97 : f32 to vector<8x2xf32>
    %480 = arith.addf %479, %478 : vector<8x2xf32>
    %481 = arith.divf %479, %480 : vector<8x2xf32>
    %482 = arith.mulf %473, %436 : vector<8x2xf32>
    %483 = arith.mulf %467, %475 : vector<8x2xf32>
    %484 = arith.addf %482, %483 : vector<8x2xf32>
    %485 = math.tanh %484 : vector<8x2xf32>
    %486 = arith.mulf %481, %485 : vector<8x2xf32>
    %c8_i32_98 = arith.constant 8 : i32
    %c0_99 = arith.constant 0 : index
    %c0_100 = arith.constant 0 : index
    %487 = vector.load %arg9[%c0_99, %c0_100] : memref<8x2xf32, #tpu.memory_space<vmem>>, vector<8x2xf32>
    tpu.vector_store %arg9[%c0_99, %c0_100], %486 {strides = array<i32>} : memref<8x2xf32, #tpu.memory_space<vmem>>, vector<8x2xf32>,
    %c0_101 = arith.constant 0 : index
    %c0_102 = arith.constant 0 : index
    %488 = vector.load %arg10[%c0_101, %c0_102] : memref<8x2xf32, #tpu.memory_space<vmem>>, vector<8x2xf32>
    tpu.vector_store %arg10[%c0_101, %c0_102], %484 {strides = array<i32>} : memref<8x2xf32, #tpu.memory_space<vmem>>, vector<8x2xf32>,
    %c0_i32_103 = arith.constant 0 : i32
    %489 = arith.cmpi eq, %arg0, %c0_i32_103 : i32
    %490 = arith.extui %489 : i1 to i32
    %c0_i32_104 = arith.constant 0 : i32
    %491 = arith.cmpi ne, %490, %c0_i32_104 : i32
    scf.if %491 {
      %cst_105 = arith.constant 0.000000e+00 : f32
      %492 = vector.broadcast %cst_105 : f32 to vector<8x2xf32>
      %493 = arith.maximumf %486, %492 : vector<8x2xf32>
      %c0_106 = arith.constant 0 : index
      %c0_107 = arith.constant 0 : index
      %494 = vector.load %arg5[%c0_106, %c0_107] : memref<2x8xf32, #tpu.memory_space<vmem>>, vector<2x8xf32>
      %cst_108 = arith.constant dense<0.000000e+00> : vector<2x2xf32>
      %495 = tpu.matmul %494, %493, %cst_108 {dimension_numbers = #tpu.dot_dimension_numbers<[1], [0], [0], [1], [0, 0, 1, 1], [], []>} : vector<2x8xf32>, vector<8x2xf32>, vector<2x2xf32> -> vector<2x2xf32>
      %c0_109 = arith.constant 0 : index
      %c0_110 = arith.constant 0 : index
      %496 = vector.load %arg6[%c0_109, %c0_110] : memref<2x1xf32, #tpu.memory_space<vmem>>, vector<2x1xf32>
      %497 = vector.broadcast %496 : vector<2x1xf32> to vector<2x2xf32>
      %498 = arith.addf %495, %497 : vector<2x2xf32>
      %499 = arith.negf %498 : vector<2x2xf32>
      %500 = math.exp %499 : vector<2x2xf32>
      %cst_111 = arith.constant 1.000000e+00 : f32
      %501 = vector.broadcast %cst_111 : f32 to vector<2x2xf32>
      %502 = arith.addf %501, %500 : vector<2x2xf32>
      %503 = arith.divf %501, %502 : vector<2x2xf32>
      %c0_112 = arith.constant 0 : index
      %c0_113 = arith.constant 0 : index
      %504 = vector.load %arg7[%c0_112, %c0_113] : memref<2x2xf32, #tpu.memory_space<vmem>>, vector<2x2xf32>
      tpu.vector_store %arg7[%c0_112, %c0_113], %503 {strides = array<i32>} : memref<2x2xf32, #tpu.memory_space<vmem>>, vector<2x2xf32>,
    } else {
    }
    return
  }
  func.func @transform_0(%arg0: i32) -> (i32, i32, i32) {
    %c0_i32 = arith.constant 0 : i32
    %c0_i32_0 = arith.constant 0 : i32
    %c0_i32_1 = arith.constant 0 : i32
    return %arg0, %c0_i32, %c0_i32_0 : i32, i32, i32
  }
  func.func @transform_1(%arg0: i32) -> (i32, i32) {
    %c0_i32 = arith.constant 0 : i32
    %c0_i32_0 = arith.constant 0 : i32
    %c0_i32_1 = arith.constant 0 : i32
    return %c0_i32, %c0_i32_0 : i32, i32
  }
  func.func @transform_2(%arg0: i32) -> (i32, i32) {
    %c0_i32 = arith.constant 0 : i32
    %c0_i32_0 = arith.constant 0 : i32
    %c0_i32_1 = arith.constant 0 : i32
    return %c0_i32, %c0_i32_0 : i32, i32
  }
  func.func @transform_3(%arg0: i32) -> (i32, i32) {
    %c0_i32 = arith.constant 0 : i32
    %c0_i32_0 = arith.constant 0 : i32
    %c0_i32_1 = arith.constant 0 : i32
    return %c0_i32, %c0_i32_0 : i32, i32
  }
  func.func @transform_4(%arg0: i32) -> (i32, i32) {
    %c0_i32 = arith.constant 0 : i32
    %c0_i32_0 = arith.constant 0 : i32
    %c0_i32_1 = arith.constant 0 : i32
    return %c0_i32, %c0_i32_0 : i32, i32
  }
  func.func @transform_5(%arg0: i32) -> (i32, i32) {
    %c0_i32 = arith.constant 0 : i32
    %c0_i32_0 = arith.constant 0 : i32
    %c0_i32_1 = arith.constant 0 : i32
    return %c0_i32, %c0_i32_0 : i32, i32
  }
  func.func @transform_6(%arg0: i32) -> (i32, i32) {
    %c0_i32 = arith.constant 0 : i32
    %c0_i32_0 = arith.constant 0 : i32
    %c0_i32_1 = arith.constant 0 : i32
    return %c0_i32, %c0_i32_0 : i32, i32
  }
}

</mosaic_0001>

<llo_original>
// kernel: lstm1_forward.1
$region0: #{lstm1_forward.1}
  #allocation0 [shape = 'u32[]', space=smem, size = 0x4, offset = 0x4, fixed_abs, tag = 'smem constant byte address 0x4 - core index']
  #allocation1 [shape = 'u32[72,128]{1,0:T(1,128)}', space=vmem, size = 0x9000, scoped, tag = 'internal scratch']
  #allocation2 [shape = 'f32[8,32,2]{2,1,0:T(8,128)}', space=vmem, size = 0x20000, scoped, tag = 'scratch operand']
  #allocation3 [shape = 'f32[8,2]{1,0:T(8,128)}', space=vmem, size = 0x1000, scoped, tag = 'scratch operand']
  #allocation4 [shape = 'f32[8,2]{1,0:T(8,128)}', space=vmem, size = 0x1000, scoped, tag = 'scratch operand']
  %s0 = inlined_call_operand.vmem [shape: f32[8,36,2], index: 0, kind: input, shape index: {}]
  %s1 = inlined_call_operand.vmem [shape: f32[32,36], index: 1, kind: input, shape index: {}]
  %s2 = inlined_call_operand.vmem [shape: f32[32,8], index: 2, kind: input, shape index: {}]
  %s3 = inlined_call_operand.vmem [shape: f32[32,1], index: 3, kind: input, shape index: {}]
  %s4 = inlined_call_operand.vmem [shape: f32[2,8], index: 4, kind: input, shape index: {}]
  %s5 = inlined_call_operand.vmem [shape: f32[2,1], index: 5, kind: input, shape index: {}]
  %s6 = inlined_call_operand.vmem [shape: f32[2,2], index: 6, kind: output, shape index: {}]
  %s7 = sld [smem:[#allocation0]]
  $region42: #{lstm1_forward.1} parent=0
    _
  %s9 = ssub.s32 1, %s7
  %s10 = scalar_select 0, %s9, %s7
  // Predicated region
  $region2: #{lstm1_forward.1} parent=0 // pred_check
    _
  $region3: #{lstm1_forward.1} parent=0 // pred_check_branch
    %12 = sbr.rel (0) target = $region5
  $region4: #{lstm1_forward.1} parent=0 // pred_region
    _
  $region5: #{lstm1_forward.1} parent=0 // pred_fallthru
    _
  // Predicated region
  $region6: #{lstm1_forward.1} parent=0 // pred_check
    _
  $region7: #{lstm1_forward.1} parent=0 // pred_check_branch
    %14 = sbr.rel (0) target = $region9
  $region8: #{lstm1_forward.1} parent=0 // pred_region
    _
  $region9: #{lstm1_forward.1} parent=0 // pred_fallthru
    _
  // Predicated region
  $region10: #{lstm1_forward.1} parent=0 // pred_check
    _
  $region11: #{lstm1_forward.1} parent=0 // pred_check_branch
    %16 = sbr.rel (0) target = $region13
  $region12: #{lstm1_forward.1} parent=0 // pred_region
    _
  $region13: #{lstm1_forward.1} parent=0 // pred_fallthru
    _
  // Predicated region
  $region14: #{lstm1_forward.1} parent=0 // pred_check
    _
  $region15: #{lstm1_forward.1} parent=0 // pred_check_branch
    %18 = sbr.rel (0) target = $region17
  $region16: #{lstm1_forward.1} parent=0 // pred_region
    _
  $region17: #{lstm1_forward.1} parent=0 // pred_fallthru
    _
  // Predicated region
  $region18: #{lstm1_forward.1} parent=0 // pred_check
    _
  $region19: #{lstm1_forward.1} parent=0 // pred_check_branch
    %20 = sbr.rel (0) target = $region21
  $region20: #{lstm1_forward.1} parent=0 // pred_region
    _
  $region21: #{lstm1_forward.1} parent=0 // pred_fallthru
    _
  // Predicated region
  $region22: #{lstm1_forward.1} parent=0 // pred_check
    _
  $region23: #{lstm1_forward.1} parent=0 // pred_check_branch
    %22 = sbr.rel (0) target = $region25
  $region24: #{lstm1_forward.1} parent=0 // pred_region
    _
  $region25: #{lstm1_forward.1} parent=0 // pred_fallthru
    _
  %p23 = scmp.eq.s32.totalorder 0, 0
  // Predicated region
  $region26: #{lstm1_forward.1} parent=0 // pred_check
    %p24 = pneg %p23
  $region27: #{lstm1_forward.1} parent=0 // pred_check_branch
    %26 = sbr.rel (%p24) target = $region29
  $region28: #{lstm1_forward.1} parent=0 // pred_region
    %vm27 = vcmask 15360
    %28 = vst.msk [vmem:[#allocation3] sm:$0xff] %vm27, 0.0
    %29 = vst.msk [vmem:[#allocation4] sm:$0xff] %vm27, 0.0
  $region29: #{lstm1_forward.1} parent=0 // pred_fallthru
    _
  %v30 = vld [vmem:[%s1] sm:$0xff]
  %v31 = vld [vmem:[%s1 + $0x8] sm:$0xff]
  %v32 = vld [vmem:[%s1 + $0x10] sm:$0xff]
  %v33 = vld [vmem:[%s1 + $0x18] sm:$0xff]
  %v34 = vld [vmem:[%s3] sm:$0xff]
  %v35 = vld [vmem:[%s3 + $0x8] sm:$0xff]
  %v36 = vld [vmem:[%s3 + $0x10] sm:$0xff]
  %v37 = vld [vmem:[%s3 + $0x18] sm:$0xff]
  %v38 = vld [vmem:[%s0] sm:$0xff]
  %v39 = vld [vmem:[%s0 + $0x8] sm:$0xff]
  %v40 = vld [vmem:[%s0 + $0x10] sm:$0xff]
  %v41 = vld [vmem:[%s0 + $0x18] sm:$0xff]
  %v42 = vld [vmem:[%s0 + $0x20] sm:$0xf]
  %44 = vset.pattern.permute.xlu0 0
  %45 = vperm.xlu0 %44, %v34
  %v46 = vpop.permute.xlu0 %45
  %49 = vset.pattern.permute.xlu0 0
  %50 = vperm.xlu0 %49, %v35
  %v51 = vpop.permute.xlu0 %50
  %54 = vset.pattern.permute.xlu0 0
  %55 = vperm.xlu0 %54, %v36
  %v56 = vpop.permute.xlu0 %55
  %59 = vset.pattern.permute.xlu0 0
  %60 = vperm.xlu0 %59, %v37
  %v61 = vpop.permute.xlu0 %60
  %vm63 = vcmask 293888
  %v65 = vsel %vm63, %v30, 0
  %v68 = vsel %vm63, %v31, 0
  %v71 = vsel %vm63, %v32, 0
  %v74 = vsel %vm63, %v33, 0
  %vm76 = vcmask 1043456
  %v78 = vsel %vm76, %v42, 0
  %80 = vmatpush.msra.mxu0 0.0
  %81 = vmatpush.msra.mxu0 0.0
  %82 = vmatpush.msra.mxu0 0.0
  %83 = vmatpush.msra.mxu0 0.0
  %84 = vmatpush.msra.mxu0 0.0
  %85 = vmatpush.msra.mxu0 0.0
  %86 = vmatpush.msra.mxu0 0.0
  %87 = vmatpush.msra.mxu0 0.0
  %88 = vmatpush.msra.mxu0 0.0
  %89 = vmatpush.msra.mxu0 0.0
  %90 = vmatpush.msra.mxu0 0.0
  %91 = vmatpush.msra.mxu0 %v78
  %92 = vmatpush.msra.mxu0 %v41
  %93 = vmatpush.msra.mxu0 %v40
  %94 = vmatpush.msra.mxu0 %v39
  %95 = vmatpush.msra.mxu0 %v38
  %96 = vmatmul.f32.gmra.mxu0 %v65
  %v97 = vpop.f32.mrf.mxu0
  %v98 = vadd.f32 %v46, %v97
  %99 = vmatmul.f32.gmra.mxu0 %v68
  %v100 = vpop.f32.mrf.mxu0
  %v101 = vadd.f32 %v51, %v100
  %102 = vmatmul.f32.gmra.mxu0 %v71
  %v103 = vpop.f32.mrf.mxu0
  %v104 = vadd.f32 %v56, %v103
  %105 = vmatmul.f32.gmra.mxu0 %v74
  %v106 = vpop.f32.mrf.mxu0
  %v107 = vadd.f32 %v61, %v106
  %108 = vdwg.mxu0
  %vm109 = vcmask 15360
  %110 = vst.msk [vmem:[#allocation2] sm:$0xff] %vm109, %v98
  %111 = vst.msk [vmem:[#allocation2 + $0x8] sm:$0xff] %vm109, %v101
  %112 = vst.msk [vmem:[#allocation2 + $0x10] sm:$0xff] %vm109, %v104
  %113 = vst.msk [vmem:[#allocation2 + $0x18] sm:$0xff] %vm109, %v107
  %s114 = scalar_lea.vmem %s0, 40
  %v115 = vld [vmem:[%s114] sm:$0xff]
  %v116 = vld [vmem:[%s114 + $0x8] sm:$0xff]
  %v117 = vld [vmem:[%s114 + $0x10] sm:$0xff]
  %v118 = vld [vmem:[%s114 + $0x18] sm:$0xff]
  %v119 = vld [vmem:[%s114 + $0x20] sm:$0xf]
  %v121 = vsel %vm76, %v119, 0
  %123 = vmatpush.msra.mxu0 0.0
  %124 = vmatpush.msra.mxu0 0.0
  %125 = vmatpush.msra.mxu0 0.0
  %126 = vmatpush.msra.mxu0 0.0
  %127 = vmatpush.msra.mxu0 0.0
  %128 = vmatpush.msra.mxu0 0.0
  %129 = vmatpush.msra.mxu0 0.0
  %130 = vmatpush.msra.mxu0 0.0
  %131 = vmatpush.msra.mxu0 0.0
  %132 = vmatpush.msra.mxu0 0.0
  %133 = vmatpush.msra.mxu0 0.0
  %134 = vmatpush.msra.mxu0 %v121
  %135 = vmatpush.msra.mxu0 %v118
  %136 = vmatpush.msra.mxu0 %v117
  %137 = vmatpush.msra.mxu0 %v116
  %138 = vmatpush.msra.mxu0 %v115
  %139 = vmatmul.f32.gmra.mxu0 %v65
  %v140 = vpop.f32.mrf.mxu0
  %v141 = vadd.f32 %v46, %v140
  %142 = vmatmul.f32.gmra.mxu0 %v68
  %v143 = vpop.f32.mrf.mxu0
  %v144 = vadd.f32 %v51, %v143
  %145 = vmatmul.f32.gmra.mxu0 %v71
  %v146 = vpop.f32.mrf.mxu0
  %v147 = vadd.f32 %v56, %v146
  %148 = vmatmul.f32.gmra.mxu0 %v74
  %v149 = vpop.f32.mrf.mxu0
  %v150 = vadd.f32 %v61, %v149
  %151 = vdwg.mxu0
  %s152 = scalar_lea.vmem [#allocation2], 32
  %153 = vst.msk [vmem:[%s152] sm:$0xff] %vm109, %v141
  %154 = vst.msk [vmem:[%s152 + $0x8] sm:$0xff] %vm109, %v144
  %155 = vst.msk [vmem:[%s152 + $0x10] sm:$0xff] %vm109, %v147
  %156 = vst.msk [vmem:[%s152 + $0x18] sm:$0xff] %vm109, %v150
  %s157 = scalar_lea.vmem %s0, 80
  %v158 = vld [vmem:[%s157] sm:$0xff]
  %v159 = vld [vmem:[%s157 + $0x8] sm:$0xff]
  %v160 = vld [vmem:[%s157 + $0x10] sm:$0xff]
  %v161 = vld [vmem:[%s157 + $0x18] sm:$0xff]
  %v162 = vld [vmem:[%s157 + $0x20] sm:$0xf]
  %v164 = vsel %vm76, %v162, 0
  %166 = vmatpush.msra.mxu0 0.0
  %167 = vmatpush.msra.mxu0 0.0
  %168 = vmatpush.msra.mxu0 0.0
  %169 = vmatpush.msra.mxu0 0.0
  %170 = vmatpush.msra.mxu0 0.0
  %171 = vmatpush.msra.mxu0 0.0
  %172 = vmatpush.msra.mxu0 0.0
  %173 = vmatpush.msra.mxu0 0.0
  %174 = vmatpush.msra.mxu0 0.0
  %175 = vmatpush.msra.mxu0 0.0
  %176 = vmatpush.msra.mxu0 0.0
  %177 = vmatpush.msra.mxu0 %v164
  %178 = vmatpush.msra.mxu0 %v161
  %179 = vmatpush.msra.mxu0 %v160
  %180 = vmatpush.msra.mxu0 %v159
  %181 = vmatpush.msra.mxu0 %v158
  %182 = vmatmul.f32.gmra.mxu0 %v65
  %v183 = vpop.f32.mrf.mxu0
  %v184 = vadd.f32 %v46, %v183
  %185 = vmatmul.f32.gmra.mxu0 %v68
  %v186 = vpop.f32.mrf.mxu0
  %v187 = vadd.f32 %v51, %v186
  %188 = vmatmul.f32.gmra.mxu0 %v71
  %v189 = vpop.f32.mrf.mxu0
  %v190 = vadd.f32 %v56, %v189
  %191 = vmatmul.f32.gmra.mxu0 %v74
  %v192 = vpop.f32.mrf.mxu0
  %v193 = vadd.f32 %v61, %v192
  %194 = vdwg.mxu0
  %s195 = scalar_lea.vmem [#allocation2], 64
  %196 = vst.msk [vmem:[%s195] sm:$0xff] %vm109, %v184
  %197 = vst.msk [vmem:[%s195 + $0x8] sm:$0xff] %vm109, %v187
  %198 = vst.msk [vmem:[%s195 + $0x10] sm:$0xff] %vm109, %v190
  %199 = vst.msk [vmem:[%s195 + $0x18] sm:$0xff] %vm109, %v193
  %s200 = scalar_lea.vmem %s0, 120
  %v201 = vld [vmem:[%s200] sm:$0xff]
  %v202 = vld [vmem:[%s200 + $0x8] sm:$0xff]
  %v203 = vld [vmem:[%s200 + $0x10] sm:$0xff]
  %v204 = vld [vmem:[%s200 + $0x18] sm:$0xff]
  %v205 = vld [vmem:[%s200 + $0x20] sm:$0xf]
  %v207 = vsel %vm76, %v205, 0
  %209 = vmatpush.msra.mxu0 0.0
  %210 = vmatpush.msra.mxu0 0.0
  %211 = vmatpush.msra.mxu0 0.0
  %212 = vmatpush.msra.mxu0 0.0
  %213 = vmatpush.msra.mxu0 0.0
  %214 = vmatpush.msra.mxu0 0.0
  %215 = vmatpush.msra.mxu0 0.0
  %216 = vmatpush.msra.mxu0 0.0
  %217 = vmatpush.msra.mxu0 0.0
  %218 = vmatpush.msra.mxu0 0.0
  %219 = vmatpush.msra.mxu0 0.0
  %220 = vmatpush.msra.mxu0 %v207
  %221 = vmatpush.msra.mxu0 %v204
  %222 = vmatpush.msra.mxu0 %v203
  %223 = vmatpush.msra.mxu0 %v202
  %224 = vmatpush.msra.mxu0 %v201
  %225 = vmatmul.f32.gmra.mxu0 %v65
  %v226 = vpop.f32.mrf.mxu0
  %v227 = vadd.f32 %v46, %v226
  %228 = vmatmul.f32.gmra.mxu0 %v68
  %v229 = vpop.f32.mrf.mxu0
  %v230 = vadd.f32 %v51, %v229
  %231 = vmatmul.f32.gmra.mxu0 %v71
  %v232 = vpop.f32.mrf.mxu0
  %v233 = vadd.f32 %v56, %v232
  %234 = vmatmul.f32.gmra.mxu0 %v74
  %v235 = vpop.f32.mrf.mxu0
  %v236 = vadd.f32 %v61, %v235
  %237 = vdwg.mxu0
  %s238 = scalar_lea.vmem [#allocation2], 96
  %239 = vst.msk [vmem:[%s238] sm:$0xff] %vm109, %v227
  %240 = vst.msk [vmem:[%s238 + $0x8] sm:$0xff] %vm109, %v230
  %241 = vst.msk [vmem:[%s238 + $0x10] sm:$0xff] %vm109, %v233
  %242 = vst.msk [vmem:[%s238 + $0x18] sm:$0xff] %vm109, %v236
  %s243 = scalar_lea.vmem %s0, 160
  %v244 = vld [vmem:[%s243] sm:$0xff]
  %v245 = vld [vmem:[%s243 + $0x8] sm:$0xff]
  %v246 = vld [vmem:[%s243 + $0x10] sm:$0xff]
  %v247 = vld [vmem:[%s243 + $0x18] sm:$0xff]
  %v248 = vld [vmem:[%s243 + $0x20] sm:$0xf]
  %v250 = vsel %vm76, %v248, 0
  %252 = vmatpush.msra.mxu0 0.0
  %253 = vmatpush.msra.mxu0 0.0
  %254 = vmatpush.msra.mxu0 0.0
  %255 = vmatpush.msra.mxu0 0.0
  %256 = vmatpush.msra.mxu0 0.0
  %257 = vmatpush.msra.mxu0 0.0
  %258 = vmatpush.msra.mxu0 0.0
  %259 = vmatpush.msra.mxu0 0.0
  %260 = vmatpush.msra.mxu0 0.0
  %261 = vmatpush.msra.mxu0 0.0
  %262 = vmatpush.msra.mxu0 0.0
  %263 = vmatpush.msra.mxu0 %v250
  %264 = vmatpush.msra.mxu0 %v247
  %265 = vmatpush.msra.mxu0 %v246
  %266 = vmatpush.msra.mxu0 %v245
  %267 = vmatpush.msra.mxu0 %v244
  %268 = vmatmul.f32.gmra.mxu0 %v65
  %v269 = vpop.f32.mrf.mxu0
  %v270 = vadd.f32 %v46, %v269
  %271 = vmatmul.f32.gmra.mxu0 %v68
  %v272 = vpop.f32.mrf.mxu0
  %v273 = vadd.f32 %v51, %v272
  %274 = vmatmul.f32.gmra.mxu0 %v71
  %v275 = vpop.f32.mrf.mxu0
  %v276 = vadd.f32 %v56, %v275
  %277 = vmatmul.f32.gmra.mxu0 %v74
  %v278 = vpop.f32.mrf.mxu0
  %v279 = vadd.f32 %v61, %v278
  %280 = vdwg.mxu0
  %s281 = scalar_lea.vmem [#allocation2], 128
  %282 = vst.msk [vmem:[%s281] sm:$0xff] %vm109, %v270
  %283 = vst.msk [vmem:[%s281 + $0x8] sm:$0xff] %vm109, %v273
  %284 = vst.msk [vmem:[%s281 + $0x10] sm:$0xff] %vm109, %v276
  %285 = vst.msk [vmem:[%s281 + $0x18] sm:$0xff] %vm109, %v279
  %s286 = scalar_lea.vmem %s0, 200
  %v287 = vld [vmem:[%s286] sm:$0xff]
  %v288 = vld [vmem:[%s286 + $0x8] sm:$0xff]
  %v289 = vld [vmem:[%s286 + $0x10] sm:$0xff]
  %v290 = vld [vmem:[%s286 + $0x18] sm:$0xff]
  %v291 = vld [vmem:[%s286 + $0x20] sm:$0xf]
  %v293 = vsel %vm76, %v291, 0
  %295 = vmatpush.msra.mxu0 0.0
  %296 = vmatpush.msra.mxu0 0.0
  %297 = vmatpush.msra.mxu0 0.0
  %298 = vmatpush.msra.mxu0 0.0
  %299 = vmatpush.msra.mxu0 0.0
  %300 = vmatpush.msra.mxu0 0.0
  %301 = vmatpush.msra.mxu0 0.0
  %302 = vmatpush.msra.mxu0 0.0
  %303 = vmatpush.msra.mxu0 0.0
  %304 = vmatpush.msra.mxu0 0.0
  %305 = vmatpush.msra.mxu0 0.0
  %306 = vmatpush.msra.mxu0 %v293
  %307 = vmatpush.msra.mxu0 %v290
  %308 = vmatpush.msra.mxu0 %v289
  %309 = vmatpush.msra.mxu0 %v288
  %310 = vmatpush.msra.mxu0 %v287
  %311 = vmatmul.f32.gmra.mxu0 %v65
  %v312 = vpop.f32.mrf.mxu0
  %v313 = vadd.f32 %v46, %v312
  %314 = vmatmul.f32.gmra.mxu0 %v68
  %v315 = vpop.f32.mrf.mxu0
  %v316 = vadd.f32 %v51, %v315
  %317 = vmatmul.f32.gmra.mxu0 %v71
  %v318 = vpop.f32.mrf.mxu0
  %v319 = vadd.f32 %v56, %v318
  %320 = vmatmul.f32.gmra.mxu0 %v74
  %v321 = vpop.f32.mrf.mxu0
  %v322 = vadd.f32 %v61, %v321
  %323 = vdwg.mxu0
  %s324 = scalar_lea.vmem [#allocation2], 160
  %325 = vst.msk [vmem:[%s324] sm:$0xff] %vm109, %v313
  %326 = vst.msk [vmem:[%s324 + $0x8] sm:$0xff] %vm109, %v316
  %327 = vst.msk [vmem:[%s324 + $0x10] sm:$0xff] %vm109, %v319
  %328 = vst.msk [vmem:[%s324 + $0x18] sm:$0xff] %vm109, %v322
  %s329 = scalar_lea.vmem %s0, 240
  %v330 = vld [vmem:[%s329] sm:$0xff]
  %v331 = vld [vmem:[%s329 + $0x8] sm:$0xff]
  %v332 = vld [vmem:[%s329 + $0x10] sm:$0xff]
  %v333 = vld [vmem:[%s329 + $0x18] sm:$0xff]
  %v334 = vld [vmem:[%s329 + $0x20] sm:$0xf]
  %v336 = vsel %vm76, %v334, 0
  %338 = vmatpush.msra.mxu0 0.0
  %339 = vmatpush.msra.mxu0 0.0
  %340 = vmatpush.msra.mxu0 0.0
  %341 = vmatpush.msra.mxu0 0.0
  %342 = vmatpush.msra.mxu0 0.0
  %343 = vmatpush.msra.mxu0 0.0
  %344 = vmatpush.msra.mxu0 0.0
  %345 = vmatpush.msra.mxu0 0.0
  %346 = vmatpush.msra.mxu0 0.0
  %347 = vmatpush.msra.mxu0 0.0
  %348 = vmatpush.msra.mxu0 0.0
  %349 = vmatpush.msra.mxu0 %v336
  %350 = vmatpush.msra.mxu0 %v333
  %351 = vmatpush.msra.mxu0 %v332
  %352 = vmatpush.msra.mxu0 %v331
  %353 = vmatpush.msra.mxu0 %v330
  %354 = vmatmul.f32.gmra.mxu0 %v65
  %v355 = vpop.f32.mrf.mxu0
  %v356 = vadd.f32 %v46, %v355
  %357 = vmatmul.f32.gmra.mxu0 %v68
  %v358 = vpop.f32.mrf.mxu0
  %v359 = vadd.f32 %v51, %v358
  %360 = vmatmul.f32.gmra.mxu0 %v71
  %v361 = vpop.f32.mrf.mxu0
  %v362 = vadd.f32 %v56, %v361
  %363 = vmatmul.f32.gmra.mxu0 %v74
  %v364 = vpop.f32.mrf.mxu0
  %v365 = vadd.f32 %v61, %v364
  %366 = vdwg.mxu0
  %s367 = scalar_lea.vmem [#allocation2], 192
  %368 = vst.msk [vmem:[%s367] sm:$0xff] %vm109, %v356
  %369 = vst.msk [vmem:[%s367 + $0x8] sm:$0xff] %vm109, %v359
  %370 = vst.msk [vmem:[%s367 + $0x10] sm:$0xff] %vm109, %v362
  %371 = vst.msk [vmem:[%s367 + $0x18] sm:$0xff] %vm109, %v365
  %s372 = scalar_lea.vmem %s0, 280
  %v373 = vld [vmem:[%s372] sm:$0xff]
  %v374 = vld [vmem:[%s372 + $0x8] sm:$0xff]
  %v375 = vld [vmem:[%s372 + $0x10] sm:$0xff]
  %v376 = vld [vmem:[%s372 + $0x18] sm:$0xff]
  %v377 = vld [vmem:[%s372 + $0x20] sm:$0xf]
  %v379 = vsel %vm76, %v377, 0
  %381 = vmatpush.msra.mxu0 0.0
  %382 = vmatpush.msra.mxu0 0.0
  %383 = vmatpush.msra.mxu0 0.0
  %384 = vmatpush.msra.mxu0 0.0
  %385 = vmatpush.msra.mxu0 0.0
  %386 = vmatpush.msra.mxu0 0.0
  %387 = vmatpush.msra.mxu0 0.0
  %388 = vmatpush.msra.mxu0 0.0
  %389 = vmatpush.msra.mxu0 0.0
  %390 = vmatpush.msra.mxu0 0.0
  %391 = vmatpush.msra.mxu0 0.0
  %392 = vmatpush.msra.mxu0 %v379
  %393 = vmatpush.msra.mxu0 %v376
  %394 = vmatpush.msra.mxu0 %v375
  %395 = vmatpush.msra.mxu0 %v374
  %396 = vmatpush.msra.mxu0 %v373
  %397 = vmatmul.f32.gmra.mxu0 %v65
  %v398 = vpop.f32.mrf.mxu0
  %v399 = vadd.f32 %v46, %v398
  %400 = vmatmul.f32.gmra.mxu0 %v68
  %v401 = vpop.f32.mrf.mxu0
  %v402 = vadd.f32 %v51, %v401
  %403 = vmatmul.f32.gmra.mxu0 %v71
  %v404 = vpop.f32.mrf.mxu0
  %v405 = vadd.f32 %v56, %v404
  %406 = vmatmul.f32.gmra.mxu0 %v74
  %v407 = vpop.f32.mrf.mxu0
  %v408 = vadd.f32 %v61, %v407
  %409 = vdwg.mxu0
  %s410 = scalar_lea.vmem [#allocation2], 224
  %411 = vst.msk [vmem:[%s410] sm:$0xff] %vm109, %v399
  %412 = vst.msk [vmem:[%s410 + $0x8] sm:$0xff] %vm109, %v402
  %413 = vst.msk [vmem:[%s410 + $0x10] sm:$0xff] %vm109, %v405
  %414 = vst.msk [vmem:[%s410 + $0x18] sm:$0xff] %vm109, %v408
  %v415 = vld [vmem:[%s2] sm:$0xff]
  %v416 = vld [vmem:[%s2 + $0x8] sm:$0xff]
  %v417 = vld [vmem:[%s2 + $0x10] sm:$0xff]
  %v418 = vld [vmem:[%s2 + $0x18] sm:$0xff]
  %420 = vset.pattern.permute.xlu0 0
  %421 = vperm.xlu0 %420, %v415
  %v422 = vpop.permute.xlu0 %421
  %425 = vset.pattern.permute.xlu0 0
  %426 = vperm.xlu0 %425, %v416
  %v427 = vpop.permute.xlu0 %426
  %430 = vset.pattern.permute.xlu0 0
  %431 = vperm.xlu0 %430, %v417
  %v432 = vpop.permute.xlu0 %431
  %435 = vset.pattern.permute.xlu0 0
  %436 = vperm.xlu0 %435, %v418
  %v437 = vpop.permute.xlu0 %436
  %439 = vset.pattern.permute.xlu0 1
  %440 = vperm.xlu0 %439, %v415
  %v441 = vpop.permute.xlu0 %440
  %443 = vset.pattern.permute.xlu0 1
  %444 = vperm.xlu0 %443, %v416
  %v445 = vpop.permute.xlu0 %444
  %447 = vset.pattern.permute.xlu0 1
  %448 = vperm.xlu0 %447, %v417
  %v449 = vpop.permute.xlu0 %448
  %451 = vset.pattern.permute.xlu0 1
  %452 = vperm.xlu0 %451, %v418
  %v453 = vpop.permute.xlu0 %452
  %455 = vset.pattern.permute.xlu0 2
  %456 = vperm.xlu0 %455, %v415
  %v457 = vpop.permute.xlu0 %456
  %459 = vset.pattern.permute.xlu0 2
  %460 = vperm.xlu0 %459, %v416
  %v461 = vpop.permute.xlu0 %460
  %463 = vset.pattern.permute.xlu0 2
  %464 = vperm.xlu0 %463, %v417
  %v465 = vpop.permute.xlu0 %464
  %467 = vset.pattern.permute.xlu0 2
  %468 = vperm.xlu0 %467, %v418
  %v469 = vpop.permute.xlu0 %468
  %471 = vset.pattern.permute.xlu0 3
  %472 = vperm.xlu0 %471, %v415
  %v473 = vpop.permute.xlu0 %472
  %475 = vset.pattern.permute.xlu0 3
  %476 = vperm.xlu0 %475, %v416
  %v477 = vpop.permute.xlu0 %476
  %479 = vset.pattern.permute.xlu0 3
  %480 = vperm.xlu0 %479, %v417
  %v481 = vpop.permute.xlu0 %480
  %483 = vset.pattern.permute.xlu0 3
  %484 = vperm.xlu0 %483, %v418
  %v485 = vpop.permute.xlu0 %484
  %487 = vset.pattern.permute.xlu0 4
  %488 = vperm.xlu0 %487, %v415
  %v489 = vpop.permute.xlu0 %488
  %491 = vset.pattern.permute.xlu0 4
  %492 = vperm.xlu0 %491, %v416
  %v493 = vpop.permute.xlu0 %492
  %495 = vset.pattern.permute.xlu0 4
  %496 = vperm.xlu0 %495, %v417
  %v497 = vpop.permute.xlu0 %496
  %499 = vset.pattern.permute.xlu0 4
  %500 = vperm.xlu0 %499, %v418
  %v501 = vpop.permute.xlu0 %500
  %v503 = vld [vmem:[#allocation3] sm:$0xff]
  %v504 = vld [vmem:[#allocation4] sm:$0xff]
  %v505 = vld [vmem:[#allocation2] sm:$0xff]
  %v506 = vld [vmem:[#allocation2 + $0x8] sm:$0xff]
  %v507 = vld [vmem:[#allocation2 + $0x10] sm:$0xff]
  %v508 = vld [vmem:[#allocation2 + $0x18] sm:$0xff]
  %v509 = vperm.slane %v503, 0
  %v510 = vmul.f32 %v422, %v509
  %v511 = vmul.f32 %v427, %v509
  %v512 = vmul.f32 %v432, %v509
  %v513 = vmul.f32 %v437, %v509
  %v514 = vadd.f32 %v505, %v510
  %v515 = vadd.f32 %v506, %v511
  %v516 = vadd.f32 %v507, %v512
  %v517 = vadd.f32 %v508, %v513
  %v518 = vperm.slane %v503, 1
  %v519 = vmul.f32 %v441, %v518
  %v520 = vmul.f32 %v445, %v518
  %v521 = vmul.f32 %v449, %v518
  %v522 = vmul.f32 %v453, %v518
  %v523 = vadd.f32 %v514, %v519
  %v524 = vadd.f32 %v515, %v520
  %v525 = vadd.f32 %v516, %v521
  %v526 = vadd.f32 %v517, %v522
  %v527 = vperm.slane %v503, 2
  %v528 = vmul.f32 %v457, %v527
  %v529 = vmul.f32 %v461, %v527
  %v530 = vmul.f32 %v465, %v527
  %v531 = vmul.f32 %v469, %v527
  %v532 = vadd.f32 %v523, %v528
  %v533 = vadd.f32 %v524, %v529
  %v534 = vadd.f32 %v525, %v530
  %v535 = vadd.f32 %v526, %v531
  %v536 = vperm.slane %v503, 3
  %v537 = vmul.f32 %v473, %v536
  %v538 = vmul.f32 %v477, %v536
  %v539 = vmul.f32 %v481, %v536
  %v540 = vmul.f32 %v485, %v536
  %v541 = vadd.f32 %v532, %v537
  %v542 = vadd.f32 %v533, %v538
  %v543 = vadd.f32 %v534, %v539
  %v544 = vadd.f32 %v535, %v540
  %v545 = vperm.slane %v503, 4
  %v546 = vmul.f32 %v489, %v545
  %v547 = vmul.f32 %v493, %v545
  %v548 = vmul.f32 %v497, %v545
  %v549 = vmul.f32 %v501, %v545
  %v550 = vadd.f32 %v541, %v546
  %v551 = vadd.f32 %v542, %v547
  %v552 = vadd.f32 %v543, %v548
  %v553 = vadd.f32 %v544, %v549
  %v554 = vxor.u32 %v550, 2147483648
  %v555 = vmul.f32 %v554, 1.442695
  %v556 = vpow.pop %v555
  %v557 = vadd.f32 %v556, 1.0
  %v558 = vrcp.pop %v557
  %v559 = vmul.f32 %v557, %v558
  %v560 = vsub.f32 1.0, %v559
  %v561 = vmul.f32 %v558, %v560
  %v562 = vadd.f32 %v558, %v561
  %vm563 = vweird.f32 %v557
  %vm564 = vweird.f32 %v558
  %vm565 = vmor %vm563, %vm564
  %v566 = vsel %vm565, %v558, %v562
  %v567 = vand.u32 2147483647, %v557
  %vm568 = vcmp.eq.f32.partialorder %v567, 8.507059e+37
  %v569 = vand.u32 %v557, 2147483648
  %v570 = vor.u32 1.1754944e-38, %v569
  %v571 = vsel %vm568, %v570, %v566
  %v572 = vmul.f32 1.0, %v571
  %v573 = vxor.u32 %v551, 2147483648
  %v574 = vmul.f32 %v573, 1.442695
  %v575 = vpow.pop %v574
  %v576 = vadd.f32 %v575, 1.0
  %v577 = vrcp.pop %v576
  %v578 = vmul.f32 %v576, %v577
  %v579 = vsub.f32 1.0, %v578
  %v580 = vmul.f32 %v577, %v579
  %v581 = vadd.f32 %v577, %v580
  %vm582 = vweird.f32 %v576
  %vm583 = vweird.f32 %v577
  %vm584 = vmor %vm582, %vm583
  %v585 = vsel %vm584, %v577, %v581
  %v586 = vand.u32 2147483647, %v576
  %vm587 = vcmp.eq.f32.partialorder %v586, 8.507059e+37
  %v588 = vand.u32 %v576, 2147483648
  %v589 = vor.u32 1.1754944e-38, %v588
  %v590 = vsel %vm587, %v589, %v585
  %v591 = vmul.f32 1.0, %v590
  %v592 = vtanh.pop %v552
  %v593 = vxor.u32 %v553, 2147483648
  %v594 = vmul.f32 %v593, 1.442695
  %v595 = vpow.pop %v594
  %v596 = vadd.f32 %v595, 1.0
  %v597 = vrcp.pop %v596
  %v598 = vmul.f32 %v596, %v597
  %v599 = vsub.f32 1.0, %v598
  %v600 = vmul.f32 %v597, %v599
  %v601 = vadd.f32 %v597, %v600
  %vm602 = vweird.f32 %v596
  %vm603 = vweird.f32 %v597
  %vm604 = vmor %vm602, %vm603
  %v605 = vsel %vm604, %v597, %v601
  %v606 = vand.u32 2147483647, %v596
  %vm607 = vcmp.eq.f32.partialorder %v606, 8.507059e+37
  %v608 = vand.u32 %v596, 2147483648
  %v609 = vor.u32 1.1754944e-38, %v608
  %v610 = vsel %vm607, %v609, %v605
  %v611 = vmul.f32 1.0, %v610
  %v612 = vmul.f32 %v591, %v504
  %v613 = vmul.f32 %v572, %v592
  %v614 = vadd.f32 %v612, %v613
  %v615 = vtanh.pop %v614
  %v616 = vmul.f32 %v611, %v615
  %v617 = vld [vmem:[%s152] sm:$0xff]
  %v618 = vld [vmem:[%s152 + $0x8] sm:$0xff]
  %v619 = vld [vmem:[%s152 + $0x10] sm:$0xff]
  %v620 = vld [vmem:[%s152 + $0x18] sm:$0xff]
  %v621 = vperm.slane %v616, 0
  %v622 = vmul.f32 %v422, %v621
  %v623 = vmul.f32 %v427, %v621
  %v624 = vmul.f32 %v432, %v621
  %v625 = vmul.f32 %v437, %v621
  %v626 = vadd.f32 %v617, %v622
  %v627 = vadd.f32 %v618, %v623
  %v628 = vadd.f32 %v619, %v624
  %v629 = vadd.f32 %v620, %v625
  %v630 = vperm.slane %v616, 1
  %v631 = vmul.f32 %v441, %v630
  %v632 = vmul.f32 %v445, %v630
  %v633 = vmul.f32 %v449, %v630
  %v634 = vmul.f32 %v453, %v630
  %v635 = vadd.f32 %v626, %v631
  %v636 = vadd.f32 %v627, %v632
  %v637 = vadd.f32 %v628, %v633
  %v638 = vadd.f32 %v629, %v634
  %v639 = vperm.slane %v616, 2
  %v640 = vmul.f32 %v457, %v639
  %v641 = vmul.f32 %v461, %v639
  %v642 = vmul.f32 %v465, %v639
  %v643 = vmul.f32 %v469, %v639
  %v644 = vadd.f32 %v635, %v640
  %v645 = vadd.f32 %v636, %v641
  %v646 = vadd.f32 %v637, %v642
  %v647 = vadd.f32 %v638, %v643
  %v648 = vperm.slane %v616, 3
  %v649 = vmul.f32 %v473, %v648
  %v650 = vmul.f32 %v477, %v648
  %v651 = vmul.f32 %v481, %v648
  %v652 = vmul.f32 %v485, %v648
  %v653 = vadd.f32 %v644, %v649
  %v654 = vadd.f32 %v645, %v650
  %v655 = vadd.f32 %v646, %v651
  %v656 = vadd.f32 %v647, %v652
  %v657 = vperm.slane %v616, 4
  %v658 = vmul.f32 %v489, %v657
  %v659 = vmul.f32 %v493, %v657
  %v660 = vmul.f32 %v497, %v657
  %v661 = vmul.f32 %v501, %v657
  %v662 = vadd.f32 %v653, %v658
  %v663 = vadd.f32 %v654, %v659
  %v664 = vadd.f32 %v655, %v660
  %v665 = vadd.f32 %v656, %v661
  %v666 = vxor.u32 %v662, 2147483648
  %v667 = vmul.f32 %v666, 1.442695
  %v668 = vpow.pop %v667
  %v669 = vadd.f32 %v668, 1.0
  %v670 = vrcp.pop %v669
  %v671 = vmul.f32 %v669, %v670
  %v672 = vsub.f32 1.0, %v671
  %v673 = vmul.f32 %v670, %v672
  %v674 = vadd.f32 %v670, %v673
  %vm675 = vweird.f32 %v669
  %vm676 = vweird.f32 %v670
  %vm677 = vmor %vm675, %vm676
  %v678 = vsel %vm677, %v670, %v674
  %v679 = vand.u32 2147483647, %v669
  %vm680 = vcmp.eq.f32.partialorder %v679, 8.507059e+37
  %v681 = vand.u32 %v669, 2147483648
  %v682 = vor.u32 1.1754944e-38, %v681
  %v683 = vsel %vm680, %v682, %v678
  %v684 = vmul.f32 1.0, %v683
  %v685 = vxor.u32 %v663, 2147483648
  %v686 = vmul.f32 %v685, 1.442695
  %v687 = vpow.pop %v686
  %v688 = vadd.f32 %v687, 1.0
  %v689 = vrcp.pop %v688
  %v690 = vmul.f32 %v688, %v689
  %v691 = vsub.f32 1.0, %v690
  %v692 = vmul.f32 %v689, %v691
  %v693 = vadd.f32 %v689, %v692
  %vm694 = vweird.f32 %v688
  %vm695 = vweird.f32 %v689
  %vm696 = vmor %vm694, %vm695
  %v697 = vsel %vm696, %v689, %v693
  %v698 = vand.u32 2147483647, %v688
  %vm699 = vcmp.eq.f32.partialorder %v698, 8.507059e+37
  %v700 = vand.u32 %v688, 2147483648
  %v701 = vor.u32 1.1754944e-38, %v700
  %v702 = vsel %vm699, %v701, %v697
  %v703 = vmul.f32 1.0, %v702
  %v704 = vtanh.pop %v664
  %v705 = vxor.u32 %v665, 2147483648
  %v706 = vmul.f32 %v705, 1.442695
  %v707 = vpow.pop %v706
  %v708 = vadd.f32 %v707, 1.0
  %v709 = vrcp.pop %v708
  %v710 = vmul.f32 %v708, %v709
  %v711 = vsub.f32 1.0, %v710
  %v712 = vmul.f32 %v709, %v711
  %v713 = vadd.f32 %v709, %v712
  %vm714 = vweird.f32 %v708
  %vm715 = vweird.f32 %v709
  %vm716 = vmor %vm714, %vm715
  %v717 = vsel %vm716, %v709, %v713
  %v718 = vand.u32 2147483647, %v708
  %vm719 = vcmp.eq.f32.partialorder %v718, 8.507059e+37
  %v720 = vand.u32 %v708, 2147483648
  %v721 = vor.u32 1.1754944e-38, %v720
  %v722 = vsel %vm719, %v721, %v717
  %v723 = vmul.f32 1.0, %v722
  %v724 = vmul.f32 %v703, %v614
  %v725 = vmul.f32 %v684, %v704
  %v726 = vadd.f32 %v724, %v725
  %v727 = vtanh.pop %v726
  %v728 = vmul.f32 %v723, %v727
  %v729 = vld [vmem:[%s195] sm:$0xff]
  %v730 = vld [vmem:[%s195 + $0x8] sm:$0xff]
  %v731 = vld [vmem:[%s195 + $0x10] sm:$0xff]
  %v732 = vld [vmem:[%s195 + $0x18] sm:$0xff]
  %v733 = vperm.slane %v728, 0
  %v734 = vmul.f32 %v422, %v733
  %v735 = vmul.f32 %v427, %v733
  %v736 = vmul.f32 %v432, %v733
  %v737 = vmul.f32 %v437, %v733
  %v738 = vadd.f32 %v729, %v734
  %v739 = vadd.f32 %v730, %v735
  %v740 = vadd.f32 %v731, %v736
  %v741 = vadd.f32 %v732, %v737
  %v742 = vperm.slane %v728, 1
  %v743 = vmul.f32 %v441, %v742
  %v744 = vmul.f32 %v445, %v742
  %v745 = vmul.f32 %v449, %v742
  %v746 = vmul.f32 %v453, %v742
  %v747 = vadd.f32 %v738, %v743
  %v748 = vadd.f32 %v739, %v744
  %v749 = vadd.f32 %v740, %v745
  %v750 = vadd.f32 %v741, %v746
  %v751 = vperm.slane %v728, 2
  %v752 = vmul.f32 %v457, %v751
  %v753 = vmul.f32 %v461, %v751
  %v754 = vmul.f32 %v465, %v751
  %v755 = vmul.f32 %v469, %v751
  %v756 = vadd.f32 %v747, %v752
  %v757 = vadd.f32 %v748, %v753
  %v758 = vadd.f32 %v749, %v754
  %v759 = vadd.f32 %v750, %v755
  %v760 = vperm.slane %v728, 3
  %v761 = vmul.f32 %v473, %v760
  %v762 = vmul.f32 %v477, %v760
  %v763 = vmul.f32 %v481, %v760
  %v764 = vmul.f32 %v485, %v760
  %v765 = vadd.f32 %v756, %v761
  %v766 = vadd.f32 %v757, %v762
  %v767 = vadd.f32 %v758, %v763
  %v768 = vadd.f32 %v759, %v764
  %v769 = vperm.slane %v728, 4
  %v770 = vmul.f32 %v489, %v769
  %v771 = vmul.f32 %v493, %v769
  %v772 = vmul.f32 %v497, %v769
  %v773 = vmul.f32 %v501, %v769
  %v774 = vadd.f32 %v765, %v770
  %v775 = vadd.f32 %v766, %v771
  %v776 = vadd.f32 %v767, %v772
  %v777 = vadd.f32 %v768, %v773
  %v778 = vxor.u32 %v774, 2147483648
  %v779 = vmul.f32 %v778, 1.442695
  %v780 = vpow.pop %v779
  %v781 = vadd.f32 %v780, 1.0
  %v782 = vrcp.pop %v781
  %v783 = vmul.f32 %v781, %v782
  %v784 = vsub.f32 1.0, %v783
  %v785 = vmul.f32 %v782, %v784
  %v786 = vadd.f32 %v782, %v785
  %vm787 = vweird.f32 %v781
  %vm788 = vweird.f32 %v782
  %vm789 = vmor %vm787, %vm788
  %v790 = vsel %vm789, %v782, %v786
  %v791 = vand.u32 2147483647, %v781
  %vm792 = vcmp.eq.f32.partialorder %v791, 8.507059e+37
  %v793 = vand.u32 %v781, 2147483648
  %v794 = vor.u32 1.1754944e-38, %v793
  %v795 = vsel %vm792, %v794, %v790
  %v796 = vmul.f32 1.0, %v795
  %v797 = vxor.u32 %v775, 2147483648
  %v798 = vmul.f32 %v797, 1.442695
  %v799 = vpow.pop %v798
  %v800 = vadd.f32 %v799, 1.0
  %v801 = vrcp.pop %v800
  %v802 = vmul.f32 %v800, %v801
  %v803 = vsub.f32 1.0, %v802
  %v804 = vmul.f32 %v801, %v803
  %v805 = vadd.f32 %v801, %v804
  %vm806 = vweird.f32 %v800
  %vm807 = vweird.f32 %v801
  %vm808 = vmor %vm806, %vm807
  %v809 = vsel %vm808, %v801, %v805
  %v810 = vand.u32 2147483647, %v800
  %vm811 = vcmp.eq.f32.partialorder %v810, 8.507059e+37
  %v812 = vand.u32 %v800, 2147483648
  %v813 = vor.u32 1.1754944e-38, %v812
  %v814 = vsel %vm811, %v813, %v809
  %v815 = vmul.f32 1.0, %v814
  %v816 = vtanh.pop %v776
  %v817 = vxor.u32 %v777, 2147483648
  %v818 = vmul.f32 %v817, 1.442695
  %v819 = vpow.pop %v818
  %v820 = vadd.f32 %v819, 1.0
  %v821 = vrcp.pop %v820
  %v822 = vmul.f32 %v820, %v821
  %v823 = vsub.f32 1.0, %v822
  %v824 = vmul.f32 %v821, %v823
  %v825 = vadd.f32 %v821, %v824
  %vm826 = vweird.f32 %v820
  %vm827 = vweird.f32 %v821
  %vm828 = vmor %vm826, %vm827
  %v829 = vsel %vm828, %v821, %v825
  %v830 = vand.u32 2147483647, %v820
  %vm831 = vcmp.eq.f32.partialorder %v830, 8.507059e+37
  %v832 = vand.u32 %v820, 2147483648
  %v833 = vor.u32 1.1754944e-38, %v832
  %v834 = vsel %vm831, %v833, %v829
  %v835 = vmul.f32 1.0, %v834
  %v836 = vmul.f32 %v815, %v726
  %v837 = vmul.f32 %v796, %v816
  %v838 = vadd.f32 %v836, %v837
  %v839 = vtanh.pop %v838
  %v840 = vmul.f32 %v835, %v839
  %v841 = vld [vmem:[%s238] sm:$0xff]
  %v842 = vld [vmem:[%s238 + $0x8] sm:$0xff]
  %v843 = vld [vmem:[%s238 + $0x10] sm:$0xff]
  %v844 = vld [vmem:[%s238 + $0x18] sm:$0xff]
  %v845 = vperm.slane %v840, 0
  %v846 = vmul.f32 %v422, %v845
  %v847 = vmul.f32 %v427, %v845
  %v848 = vmul.f32 %v432, %v845
  %v849 = vmul.f32 %v437, %v845
  %v850 = vadd.f32 %v841, %v846
  %v851 = vadd.f32 %v842, %v847
  %v852 = vadd.f32 %v843, %v848
  %v853 = vadd.f32 %v844, %v849
  %v854 = vperm.slane %v840, 1
  %v855 = vmul.f32 %v441, %v854
  %v856 = vmul.f32 %v445, %v854
  %v857 = vmul.f32 %v449, %v854
  %v858 = vmul.f32 %v453, %v854
  %v859 = vadd.f32 %v850, %v855
  %v860 = vadd.f32 %v851, %v856
  %v861 = vadd.f32 %v852, %v857
  %v862 = vadd.f32 %v853, %v858
  %v863 = vperm.slane %v840, 2
  %v864 = vmul.f32 %v457, %v863
  %v865 = vmul.f32 %v461, %v863
  %v866 = vmul.f32 %v465, %v863
  %v867 = vmul.f32 %v469, %v863
  %v868 = vadd.f32 %v859, %v864
  %v869 = vadd.f32 %v860, %v865
  %v870 = vadd.f32 %v861, %v866
  %v871 = vadd.f32 %v862, %v867
  %v872 = vperm.slane %v840, 3
  %v873 = vmul.f32 %v473, %v872
  %v874 = vmul.f32 %v477, %v872
  %v875 = vmul.f32 %v481, %v872
  %v876 = vmul.f32 %v485, %v872
  %v877 = vadd.f32 %v868, %v873
  %v878 = vadd.f32 %v869, %v874
  %v879 = vadd.f32 %v870, %v875
  %v880 = vadd.f32 %v871, %v876
  %v881 = vperm.slane %v840, 4
  %v882 = vmul.f32 %v489, %v881
  %v883 = vmul.f32 %v493, %v881
  %v884 = vmul.f32 %v497, %v881
  %v885 = vmul.f32 %v501, %v881
  %v886 = vadd.f32 %v877, %v882
  %v887 = vadd.f32 %v878, %v883
  %v888 = vadd.f32 %v879, %v884
  %v889 = vadd.f32 %v880, %v885
  %v890 = vxor.u32 %v886, 2147483648
  %v891 = vmul.f32 %v890, 1.442695
  %v892 = vpow.pop %v891
  %v893 = vadd.f32 %v892, 1.0
  %v894 = vrcp.pop %v893
  %v895 = vmul.f32 %v893, %v894
  %v896 = vsub.f32 1.0, %v895
  %v897 = vmul.f32 %v894, %v896
  %v898 = vadd.f32 %v894, %v897
  %vm899 = vweird.f32 %v893
  %vm900 = vweird.f32 %v894
  %vm901 = vmor %vm899, %vm900
  %v902 = vsel %vm901, %v894, %v898
  %v903 = vand.u32 2147483647, %v893
  %vm904 = vcmp.eq.f32.partialorder %v903, 8.507059e+37
  %v905 = vand.u32 %v893, 2147483648
  %v906 = vor.u32 1.1754944e-38, %v905
  %v907 = vsel %vm904, %v906, %v902
  %v908 = vmul.f32 1.0, %v907
  %v909 = vxor.u32 %v887, 2147483648
  %v910 = vmul.f32 %v909, 1.442695
  %v911 = vpow.pop %v910
  %v912 = vadd.f32 %v911, 1.0
  %v913 = vrcp.pop %v912
  %v914 = vmul.f32 %v912, %v913
  %v915 = vsub.f32 1.0, %v914
  %v916 = vmul.f32 %v913, %v915
  %v917 = vadd.f32 %v913, %v916
  %vm918 = vweird.f32 %v912
  %vm919 = vweird.f32 %v913
  %vm920 = vmor %vm918, %vm919
  %v921 = vsel %vm920, %v913, %v917
  %v922 = vand.u32 2147483647, %v912
  %vm923 = vcmp.eq.f32.partialorder %v922, 8.507059e+37
  %v924 = vand.u32 %v912, 2147483648
  %v925 = vor.u32 1.1754944e-38, %v924
  %v926 = vsel %vm923, %v925, %v921
  %v927 = vmul.f32 1.0, %v926
  %v928 = vtanh.pop %v888
  %v929 = vxor.u32 %v889, 2147483648
  %v930 = vmul.f32 %v929, 1.442695
  %v931 = vpow.pop %v930
  %v932 = vadd.f32 %v931, 1.0
  %v933 = vrcp.pop %v932
  %v934 = vmul.f32 %v932, %v933
  %v935 = vsub.f32 1.0, %v934
  %v936 = vmul.f32 %v933, %v935
  %v937 = vadd.f32 %v933, %v936
  %vm938 = vweird.f32 %v932
  %vm939 = vweird.f32 %v933
  %vm940 = vmor %vm938, %vm939
  %v941 = vsel %vm940, %v933, %v937
  %v942 = vand.u32 2147483647, %v932
  %vm943 = vcmp.eq.f32.partialorder %v942, 8.507059e+37
  %v944 = vand.u32 %v932, 2147483648
  %v945 = vor.u32 1.1754944e-38, %v944
  %v946 = vsel %vm943, %v945, %v941
  %v947 = vmul.f32 1.0, %v946
  %v948 = vmul.f32 %v927, %v838
  %v949 = vmul.f32 %v908, %v928
  %v950 = vadd.f32 %v948, %v949
  %v951 = vtanh.pop %v950
  %v952 = vmul.f32 %v947, %v951
  %v953 = vld [vmem:[%s281] sm:$0xff]
  %v954 = vld [vmem:[%s281 + $0x8] sm:$0xff]
  %v955 = vld [vmem:[%s281 + $0x10] sm:$0xff]
  %v956 = vld [vmem:[%s281 + $0x18] sm:$0xff]
  %v957 = vperm.slane %v952, 0
  %v958 = vmul.f32 %v422, %v957
  %v959 = vmul.f32 %v427, %v957
  %v960 = vmul.f32 %v432, %v957
  %v961 = vmul.f32 %v437, %v957
  %v962 = vadd.f32 %v953, %v958
  %v963 = vadd.f32 %v954, %v959
  %v964 = vadd.f32 %v955, %v960
  %v965 = vadd.f32 %v956, %v961
  %v966 = vperm.slane %v952, 1
  %v967 = vmul.f32 %v441, %v966
  %v968 = vmul.f32 %v445, %v966
  %v969 = vmul.f32 %v449, %v966
  %v970 = vmul.f32 %v453, %v966
  %v971 = vadd.f32 %v962, %v967
  %v972 = vadd.f32 %v963, %v968
  %v973 = vadd.f32 %v964, %v969
  %v974 = vadd.f32 %v965, %v970
  %v975 = vperm.slane %v952, 2
  %v976 = vmul.f32 %v457, %v975
  %v977 = vmul.f32 %v461, %v975
  %v978 = vmul.f32 %v465, %v975
  %v979 = vmul.f32 %v469, %v975
  %v980 = vadd.f32 %v971, %v976
  %v981 = vadd.f32 %v972, %v977
  %v982 = vadd.f32 %v973, %v978
  %v983 = vadd.f32 %v974, %v979
  %v984 = vperm.slane %v952, 3
  %v985 = vmul.f32 %v473, %v984
  %v986 = vmul.f32 %v477, %v984
  %v987 = vmul.f32 %v481, %v984
  %v988 = vmul.f32 %v485, %v984
  %v989 = vadd.f32 %v980, %v985
  %v990 = vadd.f32 %v981, %v986
  %v991 = vadd.f32 %v982, %v987
  %v992 = vadd.f32 %v983, %v988
  %v993 = vperm.slane %v952, 4
  %v994 = vmul.f32 %v489, %v993
  %v995 = vmul.f32 %v493, %v993
  %v996 = vmul.f32 %v497, %v993
  %v997 = vmul.f32 %v501, %v993
  %v998 = vadd.f32 %v989, %v994
  %v999 = vadd.f32 %v990, %v995
  %v1000 = vadd.f32 %v991, %v996
  %v1001 = vadd.f32 %v992, %v997
  %v1002 = vxor.u32 %v998, 2147483648
  %v1003 = vmul.f32 %v1002, 1.442695
  %v1004 = vpow.pop %v1003
  %v1005 = vadd.f32 %v1004, 1.0
  %v1006 = vrcp.pop %v1005
  %v1007 = vmul.f32 %v1005, %v1006
  %v1008 = vsub.f32 1.0, %v1007
  %v1009 = vmul.f32 %v1006, %v1008
  %v1010 = vadd.f32 %v1006, %v1009
  %vm1011 = vweird.f32 %v1005
  %vm1012 = vweird.f32 %v1006
  %vm1013 = vmor %vm1011, %vm1012
  %v1014 = vsel %vm1013, %v1006, %v1010
  %v1015 = vand.u32 2147483647, %v1005
  %vm1016 = vcmp.eq.f32.partialorder %v1015, 8.507059e+37
  %v1017 = vand.u32 %v1005, 2147483648
  %v1018 = vor.u32 1.1754944e-38, %v1017
  %v1019 = vsel %vm1016, %v1018, %v1014
  %v1020 = vmul.f32 1.0, %v1019
  %v1021 = vxor.u32 %v999, 2147483648
  %v1022 = vmul.f32 %v1021, 1.442695
  %v1023 = vpow.pop %v1022
  %v1024 = vadd.f32 %v1023, 1.0
  %v1025 = vrcp.pop %v1024
  %v1026 = vmul.f32 %v1024, %v1025
  %v1027 = vsub.f32 1.0, %v1026
  %v1028 = vmul.f32 %v1025, %v1027
  %v1029 = vadd.f32 %v1025, %v1028
  %vm1030 = vweird.f32 %v1024
  %vm1031 = vweird.f32 %v1025
  %vm1032 = vmor %vm1030, %vm1031
  %v1033 = vsel %vm1032, %v1025, %v1029
  %v1034 = vand.u32 2147483647, %v1024
  %vm1035 = vcmp.eq.f32.partialorder %v1034, 8.507059e+37
  %v1036 = vand.u32 %v1024, 2147483648
  %v1037 = vor.u32 1.1754944e-38, %v1036
  %v1038 = vsel %vm1035, %v1037, %v1033
  %v1039 = vmul.f32 1.0, %v1038
  %v1040 = vtanh.pop %v1000
  %v1041 = vxor.u32 %v1001, 2147483648
  %v1042 = vmul.f32 %v1041, 1.442695
  %v1043 = vpow.pop %v1042
  %v1044 = vadd.f32 %v1043, 1.0
  %v1045 = vrcp.pop %v1044
  %v1046 = vmul.f32 %v1044, %v1045
  %v1047 = vsub.f32 1.0, %v1046
  %v1048 = vmul.f32 %v1045, %v1047
  %v1049 = vadd.f32 %v1045, %v1048
  %vm1050 = vweird.f32 %v1044
  %vm1051 = vweird.f32 %v1045
  %vm1052 = vmor %vm1050, %vm1051
  %v1053 = vsel %vm1052, %v1045, %v1049
  %v1054 = vand.u32 2147483647, %v1044
  %vm1055 = vcmp.eq.f32.partialorder %v1054, 8.507059e+37
  %v1056 = vand.u32 %v1044, 2147483648
  %v1057 = vor.u32 1.1754944e-38, %v1056
  %v1058 = vsel %vm1055, %v1057, %v1053
  %v1059 = vmul.f32 1.0, %v1058
  %v1060 = vmul.f32 %v1039, %v950
  %v1061 = vmul.f32 %v1020, %v1040
  %v1062 = vadd.f32 %v1060, %v1061
  %v1063 = vtanh.pop %v1062
  %v1064 = vmul.f32 %v1059, %v1063
  %v1065 = vld [vmem:[%s324] sm:$0xff]
  %v1066 = vld [vmem:[%s324 + $0x8] sm:$0xff]
  %v1067 = vld [vmem:[%s324 + $0x10] sm:$0xff]
  %v1068 = vld [vmem:[%s324 + $0x18] sm:$0xff]
  %v1069 = vperm.slane %v1064, 0
  %v1070 = vmul.f32 %v422, %v1069
  %v1071 = vmul.f32 %v427, %v1069
  %v1072 = vmul.f32 %v432, %v1069
  %v1073 = vmul.f32 %v437, %v1069
  %v1074 = vadd.f32 %v1065, %v1070
  %v1075 = vadd.f32 %v1066, %v1071
  %v1076 = vadd.f32 %v1067, %v1072
  %v1077 = vadd.f32 %v1068, %v1073
  %v1078 = vperm.slane %v1064, 1
  %v1079 = vmul.f32 %v441, %v1078
  %v1080 = vmul.f32 %v445, %v1078
  %v1081 = vmul.f32 %v449, %v1078
  %v1082 = vmul.f32 %v453, %v1078
  %v1083 = vadd.f32 %v1074, %v1079
  %v1084 = vadd.f32 %v1075, %v1080
  %v1085 = vadd.f32 %v1076, %v1081
  %v1086 = vadd.f32 %v1077, %v1082
  %v1087 = vperm.slane %v1064, 2
  %v1088 = vmul.f32 %v457, %v1087
  %v1089 = vmul.f32 %v461, %v1087
  %v1090 = vmul.f32 %v465, %v1087
  %v1091 = vmul.f32 %v469, %v1087
  %v1092 = vadd.f32 %v1083, %v1088
  %v1093 = vadd.f32 %v1084, %v1089
  %v1094 = vadd.f32 %v1085, %v1090
  %v1095 = vadd.f32 %v1086, %v1091
  %v1096 = vperm.slane %v1064, 3
  %v1097 = vmul.f32 %v473, %v1096
  %v1098 = vmul.f32 %v477, %v1096
  %v1099 = vmul.f32 %v481, %v1096
  %v1100 = vmul.f32 %v485, %v1096
  %v1101 = vadd.f32 %v1092, %v1097
  %v1102 = vadd.f32 %v1093, %v1098
  %v1103 = vadd.f32 %v1094, %v1099
  %v1104 = vadd.f32 %v1095, %v1100
  %v1105 = vperm.slane %v1064, 4
  %v1106 = vmul.f32 %v489, %v1105
  %v1107 = vmul.f32 %v493, %v1105
  %v1108 = vmul.f32 %v497, %v1105
  %v1109 = vmul.f32 %v501, %v1105
  %v1110 = vadd.f32 %v1101, %v1106
  %v1111 = vadd.f32 %v1102, %v1107
  %v1112 = vadd.f32 %v1103, %v1108
  %v1113 = vadd.f32 %v1104, %v1109
  %v1114 = vxor.u32 %v1110, 2147483648
  %v1115 = vmul.f32 %v1114, 1.442695
  %v1116 = vpow.pop %v1115
  %v1117 = vadd.f32 %v1116, 1.0
  %v1118 = vrcp.pop %v1117
  %v1119 = vmul.f32 %v1117, %v1118
  %v1120 = vsub.f32 1.0, %v1119
  %v1121 = vmul.f32 %v1118, %v1120
  %v1122 = vadd.f32 %v1118, %v1121
  %vm1123 = vweird.f32 %v1117
  %vm1124 = vweird.f32 %v1118
  %vm1125 = vmor %vm1123, %vm1124
  %v1126 = vsel %vm1125, %v1118, %v1122
  %v1127 = vand.u32 2147483647, %v1117
  %vm1128 = vcmp.eq.f32.partialorder %v1127, 8.507059e+37
  %v1129 = vand.u32 %v1117, 2147483648
  %v1130 = vor.u32 1.1754944e-38, %v1129
  %v1131 = vsel %vm1128, %v1130, %v1126
  %v1132 = vmul.f32 1.0, %v1131
  %v1133 = vxor.u32 %v1111, 2147483648
  %v1134 = vmul.f32 %v1133, 1.442695
  %v1135 = vpow.pop %v1134
  %v1136 = vadd.f32 %v1135, 1.0
  %v1137 = vrcp.pop %v1136
  %v1138 = vmul.f32 %v1136, %v1137
  %v1139 = vsub.f32 1.0, %v1138
  %v1140 = vmul.f32 %v1137, %v1139
  %v1141 = vadd.f32 %v1137, %v1140
  %vm1142 = vweird.f32 %v1136
  %vm1143 = vweird.f32 %v1137
  %vm1144 = vmor %vm1142, %vm1143
  %v1145 = vsel %vm1144, %v1137, %v1141
  %v1146 = vand.u32 2147483647, %v1136
  %vm1147 = vcmp.eq.f32.partialorder %v1146, 8.507059e+37
  %v1148 = vand.u32 %v1136, 2147483648
  %v1149 = vor.u32 1.1754944e-38, %v1148
  %v1150 = vsel %vm1147, %v1149, %v1145
  %v1151 = vmul.f32 1.0, %v1150
  %v1152 = vtanh.pop %v1112
  %v1153 = vxor.u32 %v1113, 2147483648
  %v1154 = vmul.f32 %v1153, 1.442695
  %v1155 = vpow.pop %v1154
  %v1156 = vadd.f32 %v1155, 1.0
  %v1157 = vrcp.pop %v1156
  %v1158 = vmul.f32 %v1156, %v1157
  %v1159 = vsub.f32 1.0, %v1158
  %v1160 = vmul.f32 %v1157, %v1159
  %v1161 = vadd.f32 %v1157, %v1160
  %vm1162 = vweird.f32 %v1156
  %vm1163 = vweird.f32 %v1157
  %vm1164 = vmor %vm1162, %vm1163
  %v1165 = vsel %vm1164, %v1157, %v1161
  %v1166 = vand.u32 2147483647, %v1156
  %vm1167 = vcmp.eq.f32.partialorder %v1166, 8.507059e+37
  %v1168 = vand.u32 %v1156, 2147483648
  %v1169 = vor.u32 1.1754944e-38, %v1168
  %v1170 = vsel %vm1167, %v1169, %v1165
  %v1171 = vmul.f32 1.0, %v1170
  %v1172 = vmul.f32 %v1151, %v1062
  %v1173 = vmul.f32 %v1132, %v1152
  %v1174 = vadd.f32 %v1172, %v1173
  %v1175 = vtanh.pop %v1174
  %v1176 = vmul.f32 %v1171, %v1175
  %v1177 = vld [vmem:[%s367] sm:$0xff]
  %v1178 = vld [vmem:[%s367 + $0x8] sm:$0xff]
  %v1179 = vld [vmem:[%s367 + $0x10] sm:$0xff]
  %v1180 = vld [vmem:[%s367 + $0x18] sm:$0xff]
  %v1181 = vperm.slane %v1176, 0
  %v1182 = vmul.f32 %v422, %v1181
  %v1183 = vmul.f32 %v427, %v1181
  %v1184 = vmul.f32 %v432, %v1181
  %v1185 = vmul.f32 %v437, %v1181
  %v1186 = vadd.f32 %v1177, %v1182
  %v1187 = vadd.f32 %v1178, %v1183
  %v1188 = vadd.f32 %v1179, %v1184
  %v1189 = vadd.f32 %v1180, %v1185
  %v1190 = vperm.slane %v1176, 1
  %v1191 = vmul.f32 %v441, %v1190
  %v1192 = vmul.f32 %v445, %v1190
  %v1193 = vmul.f32 %v449, %v1190
  %v1194 = vmul.f32 %v453, %v1190
  %v1195 = vadd.f32 %v1186, %v1191
  %v1196 = vadd.f32 %v1187, %v1192
  %v1197 = vadd.f32 %v1188, %v1193
  %v1198 = vadd.f32 %v1189, %v1194
  %v1199 = vperm.slane %v1176, 2
  %v1200 = vmul.f32 %v457, %v1199
  %v1201 = vmul.f32 %v461, %v1199
  %v1202 = vmul.f32 %v465, %v1199
  %v1203 = vmul.f32 %v469, %v1199
  %v1204 = vadd.f32 %v1195, %v1200
  %v1205 = vadd.f32 %v1196, %v1201
  %v1206 = vadd.f32 %v1197, %v1202
  %v1207 = vadd.f32 %v1198, %v1203
  %v1208 = vperm.slane %v1176, 3
  %v1209 = vmul.f32 %v473, %v1208
  %v1210 = vmul.f32 %v477, %v1208
  %v1211 = vmul.f32 %v481, %v1208
  %v1212 = vmul.f32 %v485, %v1208
  %v1213 = vadd.f32 %v1204, %v1209
  %v1214 = vadd.f32 %v1205, %v1210
  %v1215 = vadd.f32 %v1206, %v1211
  %v1216 = vadd.f32 %v1207, %v1212
  %v1217 = vperm.slane %v1176, 4
  %v1218 = vmul.f32 %v489, %v1217
  %v1219 = vmul.f32 %v493, %v1217
  %v1220 = vmul.f32 %v497, %v1217
  %v1221 = vmul.f32 %v501, %v1217
  %v1222 = vadd.f32 %v1213, %v1218
  %v1223 = vadd.f32 %v1214, %v1219
  %v1224 = vadd.f32 %v1215, %v1220
  %v1225 = vadd.f32 %v1216, %v1221
  %v1226 = vxor.u32 %v1222, 2147483648
  %v1227 = vmul.f32 %v1226, 1.442695
  %v1228 = vpow.pop %v1227
  %v1229 = vadd.f32 %v1228, 1.0
  %v1230 = vrcp.pop %v1229
  %v1231 = vmul.f32 %v1229, %v1230
  %v1232 = vsub.f32 1.0, %v1231
  %v1233 = vmul.f32 %v1230, %v1232
  %v1234 = vadd.f32 %v1230, %v1233
  %vm1235 = vweird.f32 %v1229
  %vm1236 = vweird.f32 %v1230
  %vm1237 = vmor %vm1235, %vm1236
  %v1238 = vsel %vm1237, %v1230, %v1234
  %v1239 = vand.u32 2147483647, %v1229
  %vm1240 = vcmp.eq.f32.partialorder %v1239, 8.507059e+37
  %v1241 = vand.u32 %v1229, 2147483648
  %v1242 = vor.u32 1.1754944e-38, %v1241
  %v1243 = vsel %vm1240, %v1242, %v1238
  %v1244 = vmul.f32 1.0, %v1243
  %v1245 = vxor.u32 %v1223, 2147483648
  %v1246 = vmul.f32 %v1245, 1.442695
  %v1247 = vpow.pop %v1246
  %v1248 = vadd.f32 %v1247, 1.0
  %v1249 = vrcp.pop %v1248
  %v1250 = vmul.f32 %v1248, %v1249
  %v1251 = vsub.f32 1.0, %v1250
  %v1252 = vmul.f32 %v1249, %v1251
  %v1253 = vadd.f32 %v1249, %v1252
  %vm1254 = vweird.f32 %v1248
  %vm1255 = vweird.f32 %v1249
  %vm1256 = vmor %vm1254, %vm1255
  %v1257 = vsel %vm1256, %v1249, %v1253
  %v1258 = vand.u32 2147483647, %v1248
  %vm1259 = vcmp.eq.f32.partialorder %v1258, 8.507059e+37
  %v1260 = vand.u32 %v1248, 2147483648
  %v1261 = vor.u32 1.1754944e-38, %v1260
  %v1262 = vsel %vm1259, %v1261, %v1257
  %v1263 = vmul.f32 1.0, %v1262
  %v1264 = vtanh.pop %v1224
  %v1265 = vxor.u32 %v1225, 2147483648
  %v1266 = vmul.f32 %v1265, 1.442695
  %v1267 = vpow.pop %v1266
  %v1268 = vadd.f32 %v1267, 1.0
  %v1269 = vrcp.pop %v1268
  %v1270 = vmul.f32 %v1268, %v1269
  %v1271 = vsub.f32 1.0, %v1270
  %v1272 = vmul.f32 %v1269, %v1271
  %v1273 = vadd.f32 %v1269, %v1272
  %vm1274 = vweird.f32 %v1268
  %vm1275 = vweird.f32 %v1269
  %vm1276 = vmor %vm1274, %vm1275
  %v1277 = vsel %vm1276, %v1269, %v1273
  %v1278 = vand.u32 2147483647, %v1268
  %vm1279 = vcmp.eq.f32.partialorder %v1278, 8.507059e+37
  %v1280 = vand.u32 %v1268, 2147483648
  %v1281 = vor.u32 1.1754944e-38, %v1280
  %v1282 = vsel %vm1279, %v1281, %v1277
  %v1283 = vmul.f32 1.0, %v1282
  %v1284 = vmul.f32 %v1263, %v1174
  %v1285 = vmul.f32 %v1244, %v1264
  %v1286 = vadd.f32 %v1284, %v1285
  %v1287 = vtanh.pop %v1286
  %v1288 = vmul.f32 %v1283, %v1287
  %v1289 = vld [vmem:[%s410] sm:$0xff]
  %v1290 = vld [vmem:[%s410 + $0x8] sm:$0xff]
  %v1291 = vld [vmem:[%s410 + $0x10] sm:$0xff]
  %v1292 = vld [vmem:[%s410 + $0x18] sm:$0xff]
  %v1293 = vperm.slane %v1288, 0
  %v1294 = vmul.f32 %v422, %v1293
  %v1295 = vmul.f32 %v427, %v1293
  %v1296 = vmul.f32 %v432, %v1293
  %v1297 = vmul.f32 %v437, %v1293
  %v1298 = vadd.f32 %v1289, %v1294
  %v1299 = vadd.f32 %v1290, %v1295
  %v1300 = vadd.f32 %v1291, %v1296
  %v1301 = vadd.f32 %v1292, %v1297
  %v1302 = vperm.slane %v1288, 1
  %v1303 = vmul.f32 %v441, %v1302
  %v1304 = vmul.f32 %v445, %v1302
  %v1305 = vmul.f32 %v449, %v1302
  %v1306 = vmul.f32 %v453, %v1302
  %v1307 = vadd.f32 %v1298, %v1303
  %v1308 = vadd.f32 %v1299, %v1304
  %v1309 = vadd.f32 %v1300, %v1305
  %v1310 = vadd.f32 %v1301, %v1306
  %v1311 = vperm.slane %v1288, 2
  %v1312 = vmul.f32 %v457, %v1311
  %v1313 = vmul.f32 %v461, %v1311
  %v1314 = vmul.f32 %v465, %v1311
  %v1315 = vmul.f32 %v469, %v1311
  %v1316 = vadd.f32 %v1307, %v1312
  %v1317 = vadd.f32 %v1308, %v1313
  %v1318 = vadd.f32 %v1309, %v1314
  %v1319 = vadd.f32 %v1310, %v1315
  %v1320 = vperm.slane %v1288, 3
  %v1321 = vmul.f32 %v473, %v1320
  %v1322 = vmul.f32 %v477, %v1320
  %v1323 = vmul.f32 %v481, %v1320
  %v1324 = vmul.f32 %v485, %v1320
  %v1325 = vadd.f32 %v1316, %v1321
  %v1326 = vadd.f32 %v1317, %v1322
  %v1327 = vadd.f32 %v1318, %v1323
  %v1328 = vadd.f32 %v1319, %v1324
  %v1329 = vperm.slane %v1288, 4
  %v1330 = vmul.f32 %v489, %v1329
  %v1331 = vmul.f32 %v493, %v1329
  %v1332 = vmul.f32 %v497, %v1329
  %v1333 = vmul.f32 %v501, %v1329
  %v1334 = vadd.f32 %v1325, %v1330
  %v1335 = vadd.f32 %v1326, %v1331
  %v1336 = vadd.f32 %v1327, %v1332
  %v1337 = vadd.f32 %v1328, %v1333
  %v1338 = vxor.u32 %v1334, 2147483648
  %v1339 = vmul.f32 %v1338, 1.442695
  %v1340 = vpow.pop %v1339
  %v1341 = vadd.f32 %v1340, 1.0
  %v1342 = vrcp.pop %v1341
  %v1343 = vmul.f32 %v1341, %v1342
  %v1344 = vsub.f32 1.0, %v1343
  %v1345 = vmul.f32 %v1342, %v1344
  %v1346 = vadd.f32 %v1342, %v1345
  %vm1347 = vweird.f32 %v1341
  %vm1348 = vweird.f32 %v1342
  %vm1349 = vmor %vm1347, %vm1348
  %v1350 = vsel %vm1349, %v1342, %v1346
  %v1351 = vand.u32 2147483647, %v1341
  %vm1352 = vcmp.eq.f32.partialorder %v1351, 8.507059e+37
  %v1353 = vand.u32 %v1341, 2147483648
  %v1354 = vor.u32 1.1754944e-38, %v1353
  %v1355 = vsel %vm1352, %v1354, %v1350
  %v1356 = vmul.f32 1.0, %v1355
  %v1357 = vxor.u32 %v1335, 2147483648
  %v1358 = vmul.f32 %v1357, 1.442695
  %v1359 = vpow.pop %v1358
  %v1360 = vadd.f32 %v1359, 1.0
  %v1361 = vrcp.pop %v1360
  %v1362 = vmul.f32 %v1360, %v1361
  %v1363 = vsub.f32 1.0, %v1362
  %v1364 = vmul.f32 %v1361, %v1363
  %v1365 = vadd.f32 %v1361, %v1364
  %vm1366 = vweird.f32 %v1360
  %vm1367 = vweird.f32 %v1361
  %vm1368 = vmor %vm1366, %vm1367
  %v1369 = vsel %vm1368, %v1361, %v1365
  %v1370 = vand.u32 2147483647, %v1360
  %vm1371 = vcmp.eq.f32.partialorder %v1370, 8.507059e+37
  %v1372 = vand.u32 %v1360, 2147483648
  %v1373 = vor.u32 1.1754944e-38, %v1372
  %v1374 = vsel %vm1371, %v1373, %v1369
  %v1375 = vmul.f32 1.0, %v1374
  %v1376 = vtanh.pop %v1336
  %v1377 = vxor.u32 %v1337, 2147483648
  %v1378 = vmul.f32 %v1377, 1.442695
  %v1379 = vpow.pop %v1378
  %v1380 = vadd.f32 %v1379, 1.0
  %v1381 = vrcp.pop %v1380
  %v1382 = vmul.f32 %v1380, %v1381
  %v1383 = vsub.f32 1.0, %v1382
  %v1384 = vmul.f32 %v1381, %v1383
  %v1385 = vadd.f32 %v1381, %v1384
  %vm1386 = vweird.f32 %v1380
  %vm1387 = vweird.f32 %v1381
  %vm1388 = vmor %vm1386, %vm1387
  %v1389 = vsel %vm1388, %v1381, %v1385
  %v1390 = vand.u32 2147483647, %v1380
  %vm1391 = vcmp.eq.f32.partialorder %v1390, 8.507059e+37
  %v1392 = vand.u32 %v1380, 2147483648
  %v1393 = vor.u32 1.1754944e-38, %v1392
  %v1394 = vsel %vm1391, %v1393, %v1389
  %v1395 = vmul.f32 1.0, %v1394
  %v1396 = vmul.f32 %v1375, %v1286
  %v1397 = vmul.f32 %v1356, %v1376
  %v1398 = vadd.f32 %v1396, %v1397
  %v1399 = vtanh.pop %v1398
  %v1400 = vmul.f32 %v1395, %v1399
  %1401 = vst.msk [vmem:[#allocation3] sm:$0xff] %vm109, %v1400
  %1402 = vst.msk [vmem:[#allocation4] sm:$0xff] %vm109, %v1398
  // Predicated region
  $region30: #{lstm1_forward.1} parent=0 // pred_check
    %p1403 = pneg %p23
  $region31: #{lstm1_forward.1} parent=0 // pred_check_branch
    %1405 = sbr.rel (%p1403) target = $region33
  $region32: #{lstm1_forward.1} parent=0 // pred_region
    %v1406 = vmax.f32 %v1400, 0.0
    %v1407 = vld [vmem:[%s4] sm:$0x3]
    %v1408 = vld [vmem:[%s5] sm:$0x3]
    %1410 = vset.pattern.permute.xlu0 0
    %1411 = vperm.xlu0 %1410, %v1408
    %v1412 = vpop.permute.xlu0 %1411
    %vm1414 = vcmask 64512
    %v1416 = vsel %vm1414, %v1407, 0
    %1418 = vmatpush.msra.mxu0 0.0
    %1419 = vmatpush.msra.mxu0 0.0
    %1420 = vmatpush.msra.mxu0 0.0
    %1421 = vmatpush.msra.mxu0 0.0
    %1422 = vmatpush.msra.mxu0 0.0
    %1423 = vmatpush.msra.mxu0 0.0
    %1424 = vmatpush.msra.mxu0 0.0
    %1425 = vmatpush.msra.mxu0 0.0
    %1426 = vmatpush.msra.mxu0 0.0
    %1427 = vmatpush.msra.mxu0 0.0
    %1428 = vmatpush.msra.mxu0 0.0
    %1429 = vmatpush.msra.mxu0 0.0
    %1430 = vmatpush.msra.mxu0 0.0
    %1431 = vmatpush.msra.mxu0 0.0
    %1432 = vmatpush.msra.mxu0 0.0
    %1433 = vmatpush.msra.mxu0 %v1406
    %1434 = vmatmul.f32.gmra.mxu0 %v1416
    %v1435 = vpop.f32.mrf.mxu0
    %v1436 = vadd.f32 %v1412, %v1435
    %1437 = vdwg.mxu0
    %v1438 = vxor.u32 %v1436, 2147483648
    %v1439 = vmul.f32 %v1438, 1.442695
    %v1440 = vpow.pop %v1439
    %v1441 = vadd.f32 %v1440, 1.0
    %v1442 = vrcp.pop %v1441
    %v1443 = vmul.f32 %v1441, %v1442
    %v1444 = vsub.f32 1.0, %v1443
    %v1445 = vmul.f32 %v1442, %v1444
    %v1446 = vadd.f32 %v1442, %v1445
    %vm1447 = vweird.f32 %v1441
    %vm1448 = vweird.f32 %v1442
    %vm1449 = vmor %vm1447, %vm1448
    %v1450 = vsel %vm1449, %v1442, %v1446
    %v1451 = vand.u32 2147483647, %v1441
    %vm1452 = vcmp.eq.f32.partialorder %v1451, 8.507059e+37
    %v1453 = vand.u32 %v1441, 2147483648
    %v1454 = vor.u32 1.1754944e-38, %v1453
    %v1455 = vsel %vm1452, %v1454, %v1450
    %v1456 = vmul.f32 1.0, %v1455
    %vm1457 = vcmask 9216
    %1458 = vst.msk [vmem:[%s6] sm:$0x3] %vm1457, %v1456
  $region33: #{lstm1_forward.1} parent=0 // pred_fallthru
    _
  // Predicated region
  $region34: #{lstm1_forward.1} parent=0 // pred_check
    _
  $region35: #{lstm1_forward.1} parent=0 // pred_check_branch
    %1460 = sbr.rel (0) target = $region37
  $region36: #{lstm1_forward.1} parent=0 // pred_region
    _
  $region37: #{lstm1_forward.1} parent=0 // pred_fallthru
    _
  // Predicated region
  $region38: #{lstm1_forward.1} parent=0 // pred_check
    _
  $region39: #{lstm1_forward.1} parent=0 // pred_check_branch
    %1462 = sbr.rel (0) target = $region41
  $region40: #{lstm1_forward.1} parent=0 // pred_region
    _
  $region41: #{lstm1_forward.1} parent=0 // pred_fallthru
    _

</llo_original>
